<compile_context>
chip_gen: v7x
topology: tpu7x:2x2x1
jax: 0.10.0
libtpu: 0.0.40
codegen_flags: <defaults>
</compile_context>

<pallas_src>
import functools

import jax
import jax.numpy as jnp
from jax.experimental import pallas as pl
from jax.experimental.pallas import tpu as pltpu

LANE = 128


def _round_up(n, m):
    return ((n + m - 1) // m) * m


def twoway_kernel(x_ref, wf_ref, bf_ref, w2b_ref, b2b_ref, w2c_ref, b2c_ref,
                  o_ref, padh_ref, *, w_true):
    # x_ref   : (1, H+2, Wp, Cinp) bf16  -- one image, 1 zero halo row top/bottom
    # wf_ref  : (Cinp, Coutp+Cmidp) bf16   fused [w1 | w2a]
    # bf_ref  : (1,    Coutp+Cmidp) f32    fused [b1 | b2a]
    # w2b_ref : (9*Cmidp, Cmidp)    bf16   3x3 taps stacked along K (tap = dy*3+dx)
    # b2b_ref : (1, Cmidp) f32
    # w2c_ref : (Cmidp, Coutp) bf16        b2c_ref: (1, Coutp) f32
    # o_ref   : (1, tH, Wp, Coutp) bf16    -- one H-strip of the output
    # padh_ref: VMEM (tH+2, Wp, Cmidp) f32 -- h1 strip with 1-row halo
    s = pl.program_id(1)
    n_strips = pl.num_programs(1)
    _, tH, Wp, Cout = o_ref.shape
    Cin = x_ref.shape[3]
    Cmid = w2c_ref.shape[0]
    rows = tH + 2

    # ---- load the tH+2 input rows for this strip (1-row halo each side) ----
    row0 = pl.multiple_of(s * tH, tH)
    x = x_ref[0, pl.ds(row0, rows), :, :].reshape(rows * Wp, Cin)

    # ---- fused 1x1 convs (branch1 + branch2 first conv): ONE MXU matmul ----
    y = jnp.dot(x, wf_ref[...], preferred_element_type=jnp.float32) + bf_ref[...]
    y = jnp.maximum(y, 0.0)

    # branch 1 for the strip's own tH rows -> stash straight into the output
    # block (VMEM-resident for the whole grid step; no extra f32 scratch).
    o_ref[0] = y[Wp:(tH + 1) * Wp, :Cout].reshape(tH, Wp, Cout).astype(o_ref.dtype)

    # branch 2 first conv (all rows incl. halo) -> row-halo scratch
    # TODO(synk): switch padh to bf16 once packed-sublane pltpu.roll is
    # confirmed cheap on the target generation (halves this scratch).
    h1 = y[:, Cout:].reshape(rows, Wp, Cmid)
    if w_true < Wp:
        # W was padded in the wrapper: zero the padded columns so the 3x3 conv
        # at the true right edge sees exact zeros (pad=1 semantics).
        wcol = jax.lax.broadcasted_iota(jnp.int32, (rows, Wp, Cmid), 1)
        h1 = jnp.where(wcol < w_true, h1, jnp.zeros_like(h1))
    padh_ref[...] = h1

    # At the image top/bottom the halo row must be exact zero (pad=1); the
    # wrapper's zero-padded x rows would give relu(b2a) there instead.
    zrow = jnp.zeros((1, Wp, Cmid), dtype=padh_ref.dtype)

    @pl.when(s == 0)
    def _():
        padh_ref[0:1] = zrow

    @pl.when(s == n_strips - 1)
    def _():
        padh_ref[rows - 1:rows] = zrow

    # ---- 3x3 conv (padding=1): 3 accumulating matmuls, one per dy, K=3*Cmid.
    # dx shifts via XLU roll + hoisted edge masks; dy via outer-dim row offsets
    # into the halo scratch.  No im2col staging buffer.
    col = jax.lax.broadcasted_iota(jnp.int32, (tH, Wp, Cmid), 1)
    mask_l = col < 1          # wrapped column after right-roll (needs h1[x-1])
    mask_r = col >= Wp - 1    # wrapped column after left-roll  (needs h1[x+1])
    zero_t = jnp.zeros((tH, Wp, Cmid), dtype=padh_ref.dtype)

    acc = None
    for dy in range(3):
        blk = padh_ref[dy:dy + tH, :, :]                   # cheap outer-dim slice
        t0 = jnp.where(mask_l, zero_t, pltpu.roll(blk, shift=1, axis=1))
        t2 = jnp.where(mask_r, zero_t, pltpu.roll(blk, shift=Wp - 1, axis=1))
        slab = jnp.concatenate([t0, blk, t2], axis=-1)     # taps (dy,0),(dy,1),(dy,2)
        slab = slab.reshape(tH * Wp, 3 * Cmid).astype(jnp.bfloat16)
        part = jnp.dot(slab, w2b_ref[dy * 3 * Cmid:(dy + 1) * 3 * Cmid, :],
                       preferred_element_type=jnp.float32)
        acc = part if acc is None else acc + part

    h2 = jnp.maximum(acc + b2b_ref[...], 0.0).astype(jnp.bfloat16)

    # ---- final 1x1 + ReLU ----
    h3 = jnp.dot(h2, w2c_ref[...], preferred_element_type=jnp.float32) + b2c_ref[...]
    h3 = jnp.maximum(h3, 0.0)

    # ---- sum of the two branches (lane-dense bf16 store) ----
    br1 = o_ref[0].astype(jnp.float32).reshape(tH * Wp, Cout)
    o_ref[0] = (br1 + h3).reshape(tH, Wp, Cout).astype(o_ref.dtype)


def twoway_forward(x_nchw, params, *, strip_rows=None):
    """x_nchw: (N, Cin, H, W) float32. Returns (N, Cout, H, W) float32.

    TODO(synk): production callers should pass/consume NHWC directly; the two
    full-tensor transposes below are HBM round trips outside the kernel.
    TODO(synk): the module's bypass=True (identity branch1) variant is not
    implemented; default TwoWay config (bypass=False) only.
    """
    w1, b1, w2a, b2a, w2b, b2b, w2c, b2c = params
    Cin, Cout = w1.shape
    Cmid = w2a.shape[1]
    Cinp = _round_up(Cin, 8)        # K of the fused 1x1: pad to 8 only (no 32x DMA)
    Coutp = _round_up(Cout, LANE)   # lane-dense output store
    Cmidp = _round_up(Cmid, LANE)   # full-width 3x3 K / N

    x = jnp.transpose(x_nchw, (0, 2, 3, 1))                 # NHWC
    N, H, W, _ = x.shape
    Wp = _round_up(W, 8)            # keeps (rows, Wp, C) <-> (rows*Wp, C) reshapes free
    # +1 zero halo row top & bottom so every H-strip window stays in-bounds.
    x = jnp.pad(x, ((0, 0), (1, 1), (0, Wp - W), (0, Cinp - Cin))).astype(jnp.bfloat16)

    # H-strip size: largest divisor of H giving <= ~4K pixels per strip.
    if strip_rows is None:
        budget = max(1, 4096 // Wp)
        strip_rows = 1
        for d in range(1, H + 1):
            if H % d == 0 and d <= budget:
                strip_rows = d
    assert H % strip_rows == 0, "strip_rows must divide H"
    tH = strip_rows
    n_strips = H // tH

    def pad2(a, r, c):
        return jnp.pad(a, ((0, r - a.shape[0]), (0, c - a.shape[1])))

    # fused [branch1 | branch2-first] 1x1 weights/biases; matmul weights in bf16.
    wf = jnp.concatenate([pad2(w1, Cinp, Coutp), pad2(w2a, Cinp, Cmidp)],
                         axis=1).astype(jnp.bfloat16)
    bf = jnp.concatenate([pad2(b1, 1, Coutp), pad2(b2a, 1, Cmidp)], axis=1)

    w2b2 = jnp.pad(w2b, ((0, 0), (0, Cmidp - Cmid), (0, Cmidp - Cmid)))
    w2b2 = w2b2.reshape(9 * Cmidp, Cmidp).astype(jnp.bfloat16)
    b2bp = pad2(b2b, 1, Cmidp)
    w2cp = pad2(w2c, Cmidp, Coutp).astype(jnp.bfloat16)
    b2cp = pad2(b2c, 1, Coutp)

    # Per-generation VMEM limit: never hand the compiler all of v7x's 64 MiB.
    try:
        vmem_cap = pltpu.get_tpu_info().vmem_capacity_bytes
    except Exception:
        vmem_cap = 64 * 1024 * 1024
    vmem_limit = int(max(32 * 1024 * 1024,
                         min(vmem_cap - 16 * 1024 * 1024, 100 * 1024 * 1024)))

    kernel = functools.partial(twoway_kernel, w_true=W)
    out = pl.pallas_call(
        kernel,
        out_shape=jax.ShapeDtypeStruct((N, H, Wp, Coutp), jnp.bfloat16),
        grid_spec=pltpu.PrefetchScalarGridSpec(
            num_scalar_prefetch=0,
            grid=(N, n_strips),
            in_specs=[
                pl.BlockSpec((1, H + 2, Wp, Cinp), lambda b, s: (b, 0, 0, 0)),
                pl.BlockSpec(wf.shape, lambda b, s: (0, 0)),
                pl.BlockSpec(bf.shape, lambda b, s: (0, 0)),
                pl.BlockSpec(w2b2.shape, lambda b, s: (0, 0)),
                pl.BlockSpec(b2bp.shape, lambda b, s: (0, 0)),
                pl.BlockSpec(w2cp.shape, lambda b, s: (0, 0)),
                pl.BlockSpec(b2cp.shape, lambda b, s: (0, 0)),
            ],
            out_specs=pl.BlockSpec((1, tH, Wp, Coutp), lambda b, s: (b, s, 0, 0)),
            scratch_shapes=[
                pltpu.VMEM((tH + 2, Wp, Cmidp), jnp.float32),   # h1 strip + row halos
            ],
        ),
        compiler_params=pltpu.CompilerParams(
            dimension_semantics=("parallel", "parallel"),
            vmem_limit_bytes=vmem_limit,
        ),
    )(x, wf, bf, w2b2, b2bp, w2cp, b2cp)

    out = out[:, :, :W, :Cout].astype(jnp.float32)
    return jnp.transpose(out, (0, 3, 1, 2))                  # back to NCHW


def twoway_reference(x_nchw, params):
    """Plain-JAX f32 reference (uses lax.conv) for validation."""
    w1, b1, w2a, b2a, w2b_flat, b2b, w2c, b2c = params
    Cmid = w2a.shape[1]
    w2b_hwio = w2b_flat.reshape(3, 3, Cmid, Cmid)

    def conv1x1_relu(x, w, b):
        y = jnp.einsum('nchw,cd->ndhw', x, w) + b.reshape(1, -1, 1, 1)
        return jnp.maximum(y, 0.0)

    br1 = conv1x1_relu(x_nchw, w1, b1)
    h1 = conv1x1_relu(x_nchw, w2a, b2a)
    h2 = jax.lax.conv_general_dilated(
        h1, w2b_hwio, window_strides=(1, 1), padding=((1, 1), (1, 1)),
        dimension_numbers=('NCHW', 'HWIO', 'NCHW'))
    h2 = jnp.maximum(h2 + b2b.reshape(1, -1, 1, 1), 0.0)
    h3 = conv1x1_relu(h2, w2c, b2c)
    return br1 + h3


def make_params(key, in_channels, out_channels):
    cmid = out_channels // 2
    ks = jax.random.split(key, 8)
    scale = 0.1
    w1 = scale * jax.random.normal(ks[0], (in_channels, out_channels), jnp.float32)
    b1 = scale * jax.random.normal(ks[1], (1, out_channels), jnp.float32)
    w2a = scale * jax.random.normal(ks[2], (in_channels, cmid), jnp.float32)
    b2a = scale * jax.random.normal(ks[3], (1, cmid), jnp.float32)
    w2b = scale * jax.random.normal(ks[4], (9, cmid, cmid), jnp.float32)  # tap = dy*3+dx, (in,out)
    b2b = scale * jax.random.normal(ks[5], (1, cmid), jnp.float32)
    w2c = scale * jax.random.normal(ks[6], (cmid, out_channels), jnp.float32)
    b2c = scale * jax.random.normal(ks[7], (1, out_channels), jnp.float32)
    return (w1, b1, w2a, b2a, w2b, b2b, w2c, b2c)


def _check(name, x, params, strip_rows):
    out = jax.block_until_ready(twoway_forward(x, params, strip_rows=strip_rows))
    ref = twoway_reference(x, params)
    assert out.shape == ref.shape, f"{name}: shape {out.shape} vs {ref.shape}"
    max_err = float(jnp.max(jnp.abs(out - ref)))
    max_ref = float(jnp.max(jnp.abs(ref)))
    # bf16 matmul inputs / bf16 output -> loosened tolerance vs. the f32 reference.
    tol = 2e-2 + 2e-2 * max(1.0, max_ref)
    assert max_err < tol, f"{name}: max abs err = {max_err} (tol {tol})"


if __name__ == "__main__":
    key = jax.random.PRNGKey(0)
    k_x, k_p = jax.random.split(key)

    # Config 1: module-shaped small demo; 2 H-strips exercise the halo logic.
    N, Cin, H, W = 2, 4, 16, 16
    Cout = 8  # small demo; module default is 256
    x = jax.random.normal(k_x, (N, Cin, H, W), jnp.float32)
    params = make_params(k_p, Cin, Cout)
    _check("cfg1", x, params, strip_rows=8)

    # Config 2: W not a multiple of 8 -> exercises the in-kernel W-pad masking.
    k_x2, k_p2 = jax.random.split(k_p)
    x2 = jax.random.normal(k_x2, (1, 4, 8, 12), jnp.float32)
    params2 = make_params(k_p2, 4, 8)
    _check("cfg2", x2, params2, strip_rows=4)

    # Config 3: Cmid/Cout > 128 -> exercises multi-lane-tile channel slicing.
    k_x3, k_p3 = jax.random.split(k_p2)
    x3 = jax.random.normal(k_x3, (1, 4, 16, 16), jnp.float32)
    params3 = make_params(k_p3, 4, 288)
    _check("cfg3", x3, params3, strip_rows=None)  # default: single strip

    print("KERNEL_OK")
</pallas_src>

<mosaic_0001>
module attributes {stable_mosaic.version = 11 : i64} {
  func.func @twoway_kernel(%arg0: i32, %arg1: i32, %arg2: memref<1x18x16x8xbf16, #tpu.memory_space<vmem>>, %arg3: memref<8x256xbf16, #tpu.memory_space<vmem>>, %arg4: memref<1x256xf32, #tpu.memory_space<vmem>>, %arg5: memref<1152x128xbf16, #tpu.memory_space<vmem>>, %arg6: memref<1x128xf32, #tpu.memory_space<vmem>>, %arg7: memref<128x128xbf16, #tpu.memory_space<vmem>>, %arg8: memref<1x128xf32, #tpu.memory_space<vmem>>, %arg9: memref<1x8x16x128xbf16, #tpu.memory_space<vmem>>, %arg10: memref<10x16x128xf32, #tpu.memory_space<vmem>>) attributes {dimension_semantics = [#tpu.dimension_semantics<parallel>, #tpu.dimension_semantics<parallel>], iteration_bounds = array<i64: 2, 2>, scalar_prefetch = 0 : i64, scratch_operands = 1 : i64, tpu.core_type = #tpu.core_type<tc>, window_params = [{transform_indices = @transform_0, window_bounds = array<i64: 1, 18, 16, 8>}, {pipeline_mode = #tpu.pipeline_mode<synchronous>, transform_indices = @transform_1, window_bounds = array<i64: 8, 256>}, {pipeline_mode = #tpu.pipeline_mode<synchronous>, transform_indices = @transform_2, window_bounds = array<i64: 1, 256>}, {pipeline_mode = #tpu.pipeline_mode<synchronous>, transform_indices = @transform_3, window_bounds = array<i64: 1152, 128>}, {pipeline_mode = #tpu.pipeline_mode<synchronous>, transform_indices = @transform_4, window_bounds = array<i64: 1, 128>}, {pipeline_mode = #tpu.pipeline_mode<synchronous>, transform_indices = @transform_5, window_bounds = array<i64: 128, 128>}, {pipeline_mode = #tpu.pipeline_mode<synchronous>, transform_indices = @transform_6, window_bounds = array<i64: 1, 128>}, {transform_indices = @transform_7, window_bounds = array<i64: 1, 8, 16, 128>}]} {
    %c8_i32 = arith.constant 8 : i32
    %0 = arith.muli %arg1, %c8_i32 : i32
    %1 = tpu.assume_multiple %0, 8 : i32
    %c0 = arith.constant 0 : index
    %2 = arith.index_cast %1 : i32 to index
    %c0_0 = arith.constant 0 : index
    %c0_1 = arith.constant 0 : index
    %3 = vector.load %arg2[%c0, %2, %c0_0, %c0_1] : memref<1x18x16x8xbf16, #tpu.memory_space<vmem>>, vector<1x10x16x8xbf16>
    %4 = vector.shape_cast %3 : vector<1x10x16x8xbf16> to vector<10x16x8xbf16>
    %5 = vector.shape_cast %4 : vector<10x16x8xbf16> to vector<160x8xbf16>
    %c0_2 = arith.constant 0 : index
    %c0_3 = arith.constant 0 : index
    %6 = vector.load %arg3[%c0_2, %c0_3] : memref<8x256xbf16, #tpu.memory_space<vmem>>, vector<8x256xbf16>
    %cst = arith.constant dense<0.000000e+00> : vector<160x256xf32>
    %7 = tpu.matmul %5, %6, %cst {dimension_numbers = #tpu.dot_dimension_numbers<[1], [0], [0], [1], [0, 0, 1, 1], [], []>} : vector<160x8xbf16>, vector<8x256xbf16>, vector<160x256xf32> -> vector<160x256xf32>
    %c0_4 = arith.constant 0 : index
    %c0_5 = arith.constant 0 : index
    %8 = vector.load %arg4[%c0_4, %c0_5] : memref<1x256xf32, #tpu.memory_space<vmem>>, vector<1x256xf32>
    %9 = vector.broadcast %8 : vector<1x256xf32> to vector<160x256xf32>
    %10 = arith.addf %7, %9 : vector<160x256xf32>
    %cst_6 = arith.constant 0.000000e+00 : f32
    %11 = vector.broadcast %cst_6 : f32 to vector<160x256xf32>
    %12 = arith.maximumf %10, %11 : vector<160x256xf32>
    %13 = vector.extract_strided_slice %12 {offsets = [16, 0], sizes = [128, 128], strides = [1, 1]} : vector<160x256xf32> to vector<128x128xf32>
    %14 = vector.shape_cast %13 : vector<128x128xf32> to vector<8x16x128xf32>
    %15 = arith.truncf %14 : vector<8x16x128xf32> to vector<8x16x128xbf16>
    %c0_7 = arith.constant 0 : index
    %c0_8 = arith.constant 0 : index
    %c0_9 = arith.constant 0 : index
    %c0_10 = arith.constant 0 : index
    %16 = vector.load %arg9[%c0_7, %c0_8, %c0_9, %c0_10] : memref<1x8x16x128xbf16, #tpu.memory_space<vmem>>, vector<1x8x16x128xbf16>
    %17 = vector.shape_cast %16 : vector<1x8x16x128xbf16> to vector<8x16x128xbf16>
    %18 = vector.shape_cast %15 : vector<8x16x128xbf16> to vector<1x8x16x128xbf16>
    tpu.vector_store %arg9[%c0_7, %c0_8, %c0_9, %c0_10], %18 {strides = array<i32>} : memref<1x8x16x128xbf16, #tpu.memory_space<vmem>>, vector<1x8x16x128xbf16>,
    %19 = vector.extract_strided_slice %12 {offsets = [0, 128], sizes = [160, 128], strides = [1, 1]} : vector<160x256xf32> to vector<160x128xf32>
    %20 = vector.shape_cast %19 : vector<160x128xf32> to vector<10x16x128xf32>
    %c0_11 = arith.constant 0 : index
    %c0_12 = arith.constant 0 : index
    %c0_13 = arith.constant 0 : index
    %21 = vector.load %arg10[%c0_11, %c0_12, %c0_13] : memref<10x16x128xf32, #tpu.memory_space<vmem>>, vector<10x16x128xf32>
    tpu.vector_store %arg10[%c0_11, %c0_12, %c0_13], %20 {strides = array<i32>} : memref<10x16x128xf32, #tpu.memory_space<vmem>>, vector<10x16x128xf32>,
    %cst_14 = arith.constant 0.000000e+00 : f32
    %22 = vector.broadcast %cst_14 : f32 to vector<1x16x128xf32>
    %c0_i32 = arith.constant 0 : i32
    %23 = arith.cmpi eq, %arg1, %c0_i32 : i32
    %24 = arith.extui %23 : i1 to i32
    %c0_i32_15 = arith.constant 0 : i32
    %25 = arith.cmpi ne, %24, %c0_i32_15 : i32
    scf.if %25 {
      %c0_56 = arith.constant 0 : index
      %c0_57 = arith.constant 0 : index
      %c0_58 = arith.constant 0 : index
      %90 = vector.load %arg10[%c0_56, %c0_57, %c0_58] : memref<10x16x128xf32, #tpu.memory_space<vmem>>, vector<1x16x128xf32>
      tpu.vector_store %arg10[%c0_56, %c0_57, %c0_58], %22 {strides = array<i32>} : memref<10x16x128xf32, #tpu.memory_space<vmem>>, vector<1x16x128xf32>,
    } else {
    }
    %c1_i32 = arith.constant 1 : i32
    %26 = arith.cmpi eq, %arg1, %c1_i32 : i32
    %27 = arith.extui %26 : i1 to i32
    %c0_i32_16 = arith.constant 0 : i32
    %28 = arith.cmpi ne, %27, %c0_i32_16 : i32
    scf.if %28 {
      %c9 = arith.constant 9 : index
      %c0_56 = arith.constant 0 : index
      %c0_57 = arith.constant 0 : index
      %90 = vector.load %arg10[%c9, %c0_56, %c0_57] : memref<10x16x128xf32, #tpu.memory_space<vmem>>, vector<1x16x128xf32>
      tpu.vector_store %arg10[%c9, %c0_56, %c0_57], %22 {strides = array<i32>} : memref<10x16x128xf32, #tpu.memory_space<vmem>>, vector<1x16x128xf32>,
    } else {
    }
    %29 = tpu.iota {dimensions = array<i32: 1>} : vector<8x16x128xi32>
    %c1_i32_17 = arith.constant 1 : i32
    %30 = vector.broadcast %c1_i32_17 : i32 to vector<8x16x128xi32>
    %31 = arith.cmpi slt, %29, %30 : vector<8x16x128xi32>
    %c15_i32 = arith.constant 15 : i32
    %32 = vector.broadcast %c15_i32 : i32 to vector<8x16x128xi32>
    %33 = arith.cmpi sge, %29, %32 : vector<8x16x128xi32>
    %cst_18 = arith.constant 0.000000e+00 : f32
    %34 = vector.broadcast %cst_18 : f32 to vector<8x16x128xf32>
    %c0_19 = arith.constant 0 : index
    %c0_20 = arith.constant 0 : index
    %c0_21 = arith.constant 0 : index
    %35 = vector.load %arg10[%c0_19, %c0_20, %c0_21] : memref<10x16x128xf32, #tpu.memory_space<vmem>>, vector<8x16x128xf32>
    %c1_i32_22 = arith.constant 1 : i32
    %36 = tpu.dynamic_rotate %35 by %c1_i32_22 dim 1 : vector<8x16x128xf32>, i32 -> vector<8x16x128xf32>
    %37 = arith.select %31, %34, %36 : vector<8x16x128xi1>, vector<8x16x128xf32>
    %c15_i32_23 = arith.constant 15 : i32
    %38 = tpu.dynamic_rotate %35 by %c15_i32_23 dim 1 : vector<8x16x128xf32>, i32 -> vector<8x16x128xf32>
    %39 = arith.select %33, %34, %38 : vector<8x16x128xi1>, vector<8x16x128xf32>
    %40 = tpu.concatenate %37, %35, %39 in 2 : vector<8x16x128xf32>, vector<8x16x128xf32>, vector<8x16x128xf32> -> vector<8x16x384xf32>
    %41 = vector.shape_cast %40 : vector<8x16x384xf32> to vector<128x384xf32>
    %42 = arith.truncf %41 : vector<128x384xf32> to vector<128x384xbf16>
    %c0_24 = arith.constant 0 : index
    %c0_25 = arith.constant 0 : index
    %43 = vector.load %arg5[%c0_24, %c0_25] : memref<1152x128xbf16, #tpu.memory_space<vmem>>, vector<384x128xbf16>
    %cst_26 = arith.constant dense<0.000000e+00> : vector<128x128xf32>
    %44 = tpu.matmul %42, %43, %cst_26 {dimension_numbers = #tpu.dot_dimension_numbers<[1], [0], [0], [1], [0, 0, 1, 1], [], []>} : vector<128x384xbf16>, vector<384x128xbf16>, vector<128x128xf32> -> vector<128x128xf32>
    %c1 = arith.constant 1 : index
    %c0_27 = arith.constant 0 : index
    %c0_28 = arith.constant 0 : index
    %45 = vector.load %arg10[%c1, %c0_27, %c0_28] : memref<10x16x128xf32, #tpu.memory_space<vmem>>, vector<8x16x128xf32>
    %c1_i32_29 = arith.constant 1 : i32
    %46 = tpu.dynamic_rotate %45 by %c1_i32_29 dim 1 : vector<8x16x128xf32>, i32 -> vector<8x16x128xf32>
    %47 = arith.select %31, %34, %46 : vector<8x16x128xi1>, vector<8x16x128xf32>
    %c15_i32_30 = arith.constant 15 : i32
    %48 = tpu.dynamic_rotate %45 by %c15_i32_30 dim 1 : vector<8x16x128xf32>, i32 -> vector<8x16x128xf32>
    %49 = arith.select %33, %34, %48 : vector<8x16x128xi1>, vector<8x16x128xf32>
    %50 = tpu.concatenate %47, %45, %49 in 2 : vector<8x16x128xf32>, vector<8x16x128xf32>, vector<8x16x128xf32> -> vector<8x16x384xf32>
    %51 = vector.shape_cast %50 : vector<8x16x384xf32> to vector<128x384xf32>
    %52 = arith.truncf %51 : vector<128x384xf32> to vector<128x384xbf16>
    %c384 = arith.constant 384 : index
    %c0_31 = arith.constant 0 : index
    %53 = vector.load %arg5[%c384, %c0_31] : memref<1152x128xbf16, #tpu.memory_space<vmem>>, vector<384x128xbf16>
    %cst_32 = arith.constant dense<0.000000e+00> : vector<128x128xf32>
    %54 = tpu.matmul %52, %53, %cst_32 {dimension_numbers = #tpu.dot_dimension_numbers<[1], [0], [0], [1], [0, 0, 1, 1], [], []>} : vector<128x384xbf16>, vector<384x128xbf16>, vector<128x128xf32> -> vector<128x128xf32>
    %55 = arith.addf %44, %54 : vector<128x128xf32>
    %c2 = arith.constant 2 : index
    %c0_33 = arith.constant 0 : index
    %c0_34 = arith.constant 0 : index
    %56 = vector.load %arg10[%c2, %c0_33, %c0_34] : memref<10x16x128xf32, #tpu.memory_space<vmem>>, vector<8x16x128xf32>
    %c1_i32_35 = arith.constant 1 : i32
    %57 = tpu.dynamic_rotate %56 by %c1_i32_35 dim 1 : vector<8x16x128xf32>, i32 -> vector<8x16x128xf32>
    %58 = arith.select %31, %34, %57 : vector<8x16x128xi1>, vector<8x16x128xf32>
    %c15_i32_36 = arith.constant 15 : i32
    %59 = tpu.dynamic_rotate %56 by %c15_i32_36 dim 1 : vector<8x16x128xf32>, i32 -> vector<8x16x128xf32>
    %60 = arith.select %33, %34, %59 : vector<8x16x128xi1>, vector<8x16x128xf32>
    %61 = tpu.concatenate %58, %56, %60 in 2 : vector<8x16x128xf32>, vector<8x16x128xf32>, vector<8x16x128xf32> -> vector<8x16x384xf32>
    %62 = vector.shape_cast %61 : vector<8x16x384xf32> to vector<128x384xf32>
    %63 = arith.truncf %62 : vector<128x384xf32> to vector<128x384xbf16>
    %c768 = arith.constant 768 : index
    %c0_37 = arith.constant 0 : index
    %64 = vector.load %arg5[%c768, %c0_37] : memref<1152x128xbf16, #tpu.memory_space<vmem>>, vector<384x128xbf16>
    %cst_38 = arith.constant dense<0.000000e+00> : vector<128x128xf32>
    %65 = tpu.matmul %63, %64, %cst_38 {dimension_numbers = #tpu.dot_dimension_numbers<[1], [0], [0], [1], [0, 0, 1, 1], [], []>} : vector<128x384xbf16>, vector<384x128xbf16>, vector<128x128xf32> -> vector<128x128xf32>
    %66 = arith.addf %55, %65 : vector<128x128xf32>
    %c0_39 = arith.constant 0 : index
    %c0_40 = arith.constant 0 : index
    %67 = vector.load %arg6[%c0_39, %c0_40] : memref<1x128xf32, #tpu.memory_space<vmem>>, vector<1x128xf32>
    %68 = vector.broadcast %67 : vector<1x128xf32> to vector<128x128xf32>
    %69 = arith.addf %66, %68 : vector<128x128xf32>
    %cst_41 = arith.constant 0.000000e+00 : f32
    %70 = vector.broadcast %cst_41 : f32 to vector<128x128xf32>
    %71 = arith.maximumf %69, %70 : vector<128x128xf32>
    %72 = arith.truncf %71 : vector<128x128xf32> to vector<128x128xbf16>
    %c0_42 = arith.constant 0 : index
    %c0_43 = arith.constant 0 : index
    %73 = vector.load %arg7[%c0_42, %c0_43] : memref<128x128xbf16, #tpu.memory_space<vmem>>, vector<128x128xbf16>
    %cst_44 = arith.constant dense<0.000000e+00> : vector<128x128xf32>
    %74 = tpu.matmul %72, %73, %cst_44 {dimension_numbers = #tpu.dot_dimension_numbers<[1], [0], [0], [1], [0, 0, 1, 1], [], []>} : vector<128x128xbf16>, vector<128x128xbf16>, vector<128x128xf32> -> vector<128x128xf32>
    %c0_45 = arith.constant 0 : index
    %c0_46 = arith.constant 0 : index
    %75 = vector.load %arg8[%c0_45, %c0_46] : memref<1x128xf32, #tpu.memory_space<vmem>>, vector<1x128xf32>
    %76 = vector.broadcast %75 : vector<1x128xf32> to vector<128x128xf32>
    %77 = arith.addf %74, %76 : vector<128x128xf32>
    %cst_47 = arith.constant 0.000000e+00 : f32
    %78 = vector.broadcast %cst_47 : f32 to vector<128x128xf32>
    %79 = arith.maximumf %77, %78 : vector<128x128xf32>
    %c0_48 = arith.constant 0 : index
    %c0_49 = arith.constant 0 : index
    %c0_50 = arith.constant 0 : index
    %c0_51 = arith.constant 0 : index
    %80 = vector.load %arg9[%c0_48, %c0_49, %c0_50, %c0_51] : memref<1x8x16x128xbf16, #tpu.memory_space<vmem>>, vector<1x8x16x128xbf16>
    %81 = vector.shape_cast %80 : vector<1x8x16x128xbf16> to vector<8x16x128xbf16>
    %82 = arith.extf %81 : vector<8x16x128xbf16> to vector<8x16x128xf32>
    %83 = vector.shape_cast %82 : vector<8x16x128xf32> to vector<128x128xf32>
    %84 = arith.addf %83, %79 : vector<128x128xf32>
    %85 = vector.shape_cast %84 : vector<128x128xf32> to vector<8x16x128xf32>
    %86 = arith.truncf %85 : vector<8x16x128xf32> to vector<8x16x128xbf16>
    %c0_52 = arith.constant 0 : index
    %c0_53 = arith.constant 0 : index
    %c0_54 = arith.constant 0 : index
    %c0_55 = arith.constant 0 : index
    %87 = vector.load %arg9[%c0_52, %c0_53, %c0_54, %c0_55] : memref<1x8x16x128xbf16, #tpu.memory_space<vmem>>, vector<1x8x16x128xbf16>
    %88 = vector.shape_cast %87 : vector<1x8x16x128xbf16> to vector<8x16x128xbf16>
    %89 = vector.shape_cast %86 : vector<8x16x128xbf16> to vector<1x8x16x128xbf16>
    tpu.vector_store %arg9[%c0_52, %c0_53, %c0_54, %c0_55], %89 {strides = array<i32>} : memref<1x8x16x128xbf16, #tpu.memory_space<vmem>>, vector<1x8x16x128xbf16>,
    return
  }
  func.func @transform_0(%arg0: i32, %arg1: i32) -> (i32, i32, i32, i32) {
    %c0_i32 = arith.constant 0 : i32
    %c0_i32_0 = arith.constant 0 : i32
    %c0_i32_1 = arith.constant 0 : i32
    %c0_i32_2 = arith.constant 0 : i32
    return %arg0, %c0_i32, %c0_i32_0, %c0_i32_1 : i32, i32, i32, i32
  }
  func.func @transform_1(%arg0: i32, %arg1: i32) -> (i32, i32) {
    %c0_i32 = arith.constant 0 : i32
    %c0_i32_0 = arith.constant 0 : i32
    %c0_i32_1 = arith.constant 0 : i32
    return %c0_i32, %c0_i32_0 : i32, i32
  }
  func.func @transform_2(%arg0: i32, %arg1: i32) -> (i32, i32) {
    %c0_i32 = arith.constant 0 : i32
    %c0_i32_0 = arith.constant 0 : i32
    %c0_i32_1 = arith.constant 0 : i32
    return %c0_i32, %c0_i32_0 : i32, i32
  }
  func.func @transform_3(%arg0: i32, %arg1: i32) -> (i32, i32) {
    %c0_i32 = arith.constant 0 : i32
    %c0_i32_0 = arith.constant 0 : i32
    %c0_i32_1 = arith.constant 0 : i32
    return %c0_i32, %c0_i32_0 : i32, i32
  }
  func.func @transform_4(%arg0: i32, %arg1: i32) -> (i32, i32) {
    %c0_i32 = arith.constant 0 : i32
    %c0_i32_0 = arith.constant 0 : i32
    %c0_i32_1 = arith.constant 0 : i32
    return %c0_i32, %c0_i32_0 : i32, i32
  }
  func.func @transform_5(%arg0: i32, %arg1: i32) -> (i32, i32) {
    %c0_i32 = arith.constant 0 : i32
    %c0_i32_0 = arith.constant 0 : i32
    %c0_i32_1 = arith.constant 0 : i32
    return %c0_i32, %c0_i32_0 : i32, i32
  }
  func.func @transform_6(%arg0: i32, %arg1: i32) -> (i32, i32) {
    %c0_i32 = arith.constant 0 : i32
    %c0_i32_0 = arith.constant 0 : i32
    %c0_i32_1 = arith.constant 0 : i32
    return %c0_i32, %c0_i32_0 : i32, i32
  }
  func.func @transform_7(%arg0: i32, %arg1: i32) -> (i32, i32, i32, i32) {
    %c0_i32 = arith.constant 0 : i32
    %c0_i32_0 = arith.constant 0 : i32
    %c0_i32_1 = arith.constant 0 : i32
    return %arg0, %arg1, %c0_i32, %c0_i32_0 : i32, i32, i32, i32
  }
}

</mosaic_0001>

<llo_original>
// kernel: tpu_custom_call.1
$region0: #{tpu_custom_call.1}
  #allocation0 [shape = 'u32[]', space=smem, size = 0x4, offset = 0x4, fixed_abs, tag = 'smem constant byte address 0x4 - core index']
  #allocation1 [shape = 'u32[144,128]{1,0:T(1,128)}', space=vmem, size = 0x12000, scoped, tag = 'internal scratch']
  #allocation2 [shape = 'f32[10,16,128]{2,1,0:T(8,128)}', space=vmem, size = 0x14000, scoped, tag = 'scratch operand']
  %s0 = inlined_call_operand.vmem [shape: bf16[2,18,16,8], index: 0, kind: input, shape index: {}]
  %s1 = inlined_call_operand.vmem [shape: bf16[8,256], index: 1, kind: input, shape index: {}]
  %s2 = inlined_call_operand.vmem [shape: f32[1,256], index: 2, kind: input, shape index: {}]
  %s3 = inlined_call_operand.hbm [shape: bf16[1152,128], index: 3, kind: input, shape index: {}]
  %s4 = inlined_call_operand.vmem [shape: f32[1,128], index: 4, kind: input, shape index: {}]
  %s5 = inlined_call_operand.vmem [shape: bf16[128,128], index: 5, kind: input, shape index: {}]
  %s6 = inlined_call_operand.vmem [shape: f32[1,128], index: 6, kind: input, shape index: {}]
  %s7 = inlined_call_operand.hbm [shape: bf16[2,16,16,128], index: 7, kind: output, shape index: {}]
  %s8 = sld [smem:[#allocation0]]
  $region73: #{tpu_custom_call.1} parent=0
    _
  %s10 = ssub.s32 1, %s8
  %s11 = scalar_select 0, %s10, %s8
  $region1: #{tpu_custom_call.1} parent=0
    #allocation3 [shape = 'u8[294912]{0}', space=vmem, size = 0x48000, scoped, tag = 'input window, operand 3, single buffered']
    #allocation4 [shape = 's32[2]{0}', space=sflag, size = 0x8, scoped, tag = 'scoped memory for tpu_custom_call.1']
    #allocation5 [shape = 's32[2]{0}', space=sflag, size = 0x8, scoped, tag = 'scoped memory for tpu_custom_call.1']
    #allocation6 [shape = 'u8[65536]{0}', space=vmem, size = 0x10000, scoped, tag = 'output window, operand 0']
    %12 = vsyncpa [#allocation4], 0
    %13 = vsyncpa [#allocation5], 0
    %s14 = scalar_lea.sflag [#allocation5], 1
    %15 = vsyncpa %s14, 0
    loop: start=0, step=1, limit=6
    $region2: #{tpu_custom_call.1} parent=1 // loop_pre_header
      _
    $region3: #{tpu_custom_call.1} parent=1 // loop_header
      %s17 = sphi 0, %s21
      %p18 = scmp.ge.s32.totalorder %s17, 6
      %s24 = sphi 0, %s36
      %s25 = sphi 0, %s32
      %s26 = sphi 0, %s24
      %s27 = sphi 0, %s25
      %s28 = sphi 0, %s26
      %s29 = sphi 0, %s27
      %s39 = sphi 0, %s41
      %s42 = sphi 0, %s39
      %s43 = sphi 0, %s42
      %s59 = sphi 0, %s43
      %s63 = sphi 0, %s63
      %s65 = sphi 0, %s63
      %s66 = sphi 0, %s65
      %s80 = sphi 0, %s66
      %s84 = sphi 0, %s84
      %s86 = sphi 0, %s84
      %s87 = sphi 0, %s86
      %s101 = sphi 0, %s87
      %s105 = sphi 0, %s105
      %s107 = sphi 0, %s105
      %s108 = sphi 0, %s107
      %s122 = sphi 0, %s108
      %s126 = sphi 0, %s126
      %s128 = sphi 0, %s126
      %s129 = sphi 0, %s128
      %s143 = sphi 0, %s129
      %s147 = sphi 0, %s147
      %s149 = sphi 0, %s147
      %s150 = sphi 0, %s149
      %s164 = sphi 0, %s150
      %s168 = sphi 0, %s168
      %s170 = sphi 0, %s168
      %s171 = sphi 0, %s170
      %s185 = sphi 0, %s171
      %s193 = sphi 0, %s195
      %s196 = sphi 0, %s193
      %s197 = sphi 0, %s196
      %s213 = sphi 0, %s197
    $region4: #{tpu_custom_call.1} parent=1 // loop_header_branch
      %20 = sbr.rel (%p18) target = $region8
    $region5: #{tpu_custom_call.1} parent=1 // loop_body
      %s22 = ssub.s32 %s17, 1
      %s23 = ssub.s32 %s17, 2
      %s30 = sadd.s32 1, %s25
      %p31 = scmp.ge.s32.totalorder %s30, 2
      %s32 = scalar_select %p31, 0, %s30
      %s33 = sadd.s32 1, %s24
      %s34 = scalar_select %p31, %s33, %s24
      %p35 = scmp.ge.s32.totalorder %s34, 2
      %s36 = scalar_select %p35, 0, %s34
      %s37 = ssub.s32 %s24, %s36
      %p38 = scmp.eq.s32.totalorder %s37, 0
      %s40 = sadd.s32 %s39, 1
      %s41 = scalar_select %p38, %s39, %s40
      %p44 = pneg %p38
      %p45 = scmp.eq.s32.totalorder %s17, 3
      %p46 = por %p44, %p45
      %p47 = scmp.ne.s32.totalorder %s39, %s42
      %p48 = scmp.eq.s32.totalorder %s17, 0
      %p49 = por %p47, %p48
      %p50 = scmp.ne.s32.totalorder %s39, %s42
      %p51 = scmp.eq.s32.totalorder %s22, 3
      %p52 = por %p50, %p51
      %p53 = scmp.ne.s32.totalorder %s42, %s43
      %p54 = scmp.eq.s32.totalorder %s22, 0
      %p55 = por %p53, %p54
      %p56 = scmp.ne.s32.totalorder %s42, %s43
      %p57 = scmp.eq.s32.totalorder %s23, 3
      %p58 = por %p56, %p57
      %p60 = scmp.ne.s32.totalorder %s43, %s59
      %p61 = scmp.eq.s32.totalorder %s23, 0
      %p62 = por %p60, %p61
      %s64 = sadd.s32 %s63, 1
      %p67 = scmp.eq.s32.totalorder %s17, 3
      %p68 = scmp.ne.s32.totalorder %s63, %s65
      %p69 = scmp.eq.s32.totalorder %s17, 0
      %p70 = por %p68, %p69
      %p71 = scmp.ne.s32.totalorder %s63, %s65
      %p72 = scmp.eq.s32.totalorder %s22, 3
      %p73 = por %p71, %p72
      %p74 = scmp.ne.s32.totalorder %s65, %s66
      %p75 = scmp.eq.s32.totalorder %s22, 0
      %p76 = por %p74, %p75
      %p77 = scmp.ne.s32.totalorder %s65, %s66
      %p78 = scmp.eq.s32.totalorder %s23, 3
      %p79 = por %p77, %p78
      %p81 = scmp.ne.s32.totalorder %s66, %s80
      %p82 = scmp.eq.s32.totalorder %s23, 0
      %p83 = por %p81, %p82
      %s85 = sadd.s32 %s84, 1
      %p88 = scmp.eq.s32.totalorder %s17, 3
      %p89 = scmp.ne.s32.totalorder %s84, %s86
      %p90 = scmp.eq.s32.totalorder %s17, 0
      %p91 = por %p89, %p90
      %p92 = scmp.ne.s32.totalorder %s84, %s86
      %p93 = scmp.eq.s32.totalorder %s22, 3
      %p94 = por %p92, %p93
      %p95 = scmp.ne.s32.totalorder %s86, %s87
      %p96 = scmp.eq.s32.totalorder %s22, 0
      %p97 = por %p95, %p96
      %p98 = scmp.ne.s32.totalorder %s86, %s87
      %p99 = scmp.eq.s32.totalorder %s23, 3
      %p100 = por %p98, %p99
      %p102 = scmp.ne.s32.totalorder %s87, %s101
      %p103 = scmp.eq.s32.totalorder %s23, 0
      %p104 = por %p102, %p103
      %s106 = sadd.s32 %s105, 1
      %p109 = scmp.eq.s32.totalorder %s17, 3
      %p110 = scmp.ne.s32.totalorder %s105, %s107
      %p111 = scmp.eq.s32.totalorder %s17, 0
      %p112 = por %p110, %p111
      %p113 = scmp.ne.s32.totalorder %s105, %s107
      %p114 = scmp.eq.s32.totalorder %s22, 3
      %p115 = por %p113, %p114
      %p116 = scmp.ne.s32.totalorder %s107, %s108
      %p117 = scmp.eq.s32.totalorder %s22, 0
      %p118 = por %p116, %p117
      %p119 = scmp.ne.s32.totalorder %s107, %s108
      %p120 = scmp.eq.s32.totalorder %s23, 3
      %p121 = por %p119, %p120
      %p123 = scmp.ne.s32.totalorder %s108, %s122
      %p124 = scmp.eq.s32.totalorder %s23, 0
      %p125 = por %p123, %p124
      %s127 = sadd.s32 %s126, 1
      %p130 = scmp.eq.s32.totalorder %s17, 3
      %p131 = scmp.ne.s32.totalorder %s126, %s128
      %p132 = scmp.eq.s32.totalorder %s17, 0
      %p133 = por %p131, %p132
      %p134 = scmp.ne.s32.totalorder %s126, %s128
      %p135 = scmp.eq.s32.totalorder %s22, 3
      %p136 = por %p134, %p135
      %p137 = scmp.ne.s32.totalorder %s128, %s129
      %p138 = scmp.eq.s32.totalorder %s22, 0
      %p139 = por %p137, %p138
      %p140 = scmp.ne.s32.totalorder %s128, %s129
      %p141 = scmp.eq.s32.totalorder %s23, 3
      %p142 = por %p140, %p141
      %p144 = scmp.ne.s32.totalorder %s129, %s143
      %p145 = scmp.eq.s32.totalorder %s23, 0
      %p146 = por %p144, %p145
      %s148 = sadd.s32 %s147, 1
      %p151 = scmp.eq.s32.totalorder %s17, 3
      %p152 = scmp.ne.s32.totalorder %s147, %s149
      %p153 = scmp.eq.s32.totalorder %s17, 0
      %p154 = por %p152, %p153
      %p155 = scmp.ne.s32.totalorder %s147, %s149
      %p156 = scmp.eq.s32.totalorder %s22, 3
      %p157 = por %p155, %p156
      %p158 = scmp.ne.s32.totalorder %s149, %s150
      %p159 = scmp.eq.s32.totalorder %s22, 0
      %p160 = por %p158, %p159
      %p161 = scmp.ne.s32.totalorder %s149, %s150
      %p162 = scmp.eq.s32.totalorder %s23, 3
      %p163 = por %p161, %p162
      %p165 = scmp.ne.s32.totalorder %s150, %s164
      %p166 = scmp.eq.s32.totalorder %s23, 0
      %p167 = por %p165, %p166
      %s169 = sadd.s32 %s168, 1
      %p172 = scmp.eq.s32.totalorder %s17, 3
      %p173 = scmp.ne.s32.totalorder %s168, %s170
      %p174 = scmp.eq.s32.totalorder %s17, 0
      %p175 = por %p173, %p174
      %p176 = scmp.ne.s32.totalorder %s168, %s170
      %p177 = scmp.eq.s32.totalorder %s22, 3
      %p178 = por %p176, %p177
      %p179 = scmp.ne.s32.totalorder %s170, %s171
      %p180 = scmp.eq.s32.totalorder %s22, 0
      %p181 = por %p179, %p180
      %p182 = scmp.ne.s32.totalorder %s170, %s171
      %p183 = scmp.eq.s32.totalorder %s23, 3
      %p184 = por %p182, %p183
      %p186 = scmp.ne.s32.totalorder %s171, %s185
      %p187 = scmp.eq.s32.totalorder %s23, 0
      %p188 = por %p186, %p187
      %s189 = ssub.s32 %s24, %s36
      %s190 = ssub.s32 %s25, %s32
      %s191 = sor.u32 %s189, %s190
      %p192 = scmp.eq.s32.totalorder %s191, 0
      %s194 = sadd.s32 %s193, 1
      %s195 = scalar_select %p192, %s193, %s194
      %p198 = pneg %p192
      %p199 = scmp.eq.s32.totalorder %s17, 3
      %p200 = por %p198, %p199
      %p201 = scmp.ne.s32.totalorder %s193, %s196
      %p202 = scmp.eq.s32.totalorder %s17, 0
      %p203 = por %p201, %p202
      %p204 = scmp.ne.s32.totalorder %s193, %s196
      %p205 = scmp.eq.s32.totalorder %s22, 3
      %p206 = por %p204, %p205
      %p207 = scmp.ne.s32.totalorder %s196, %s197
      %p208 = scmp.eq.s32.totalorder %s22, 0
      %p209 = por %p207, %p208
      %p210 = scmp.ne.s32.totalorder %s196, %s197
      %p211 = scmp.eq.s32.totalorder %s23, 3
      %p212 = por %p210, %p211
      %p214 = scmp.ne.s32.totalorder %s197, %s213
      %p215 = scmp.eq.s32.totalorder %s23, 0
      %p216 = por %p214, %p215
      %p217 = scmp.le.s32.totalorder 1, %s17
      %p218 = scmp.lt.s32.totalorder %s17, 5
      %p219 = pnand %p217, %p218
      %p220 = pneg %p219
      // Predicated region
      $region9: #{tpu_custom_call.1} parent=5 // pred_check
        _
      $region10: #{tpu_custom_call.1} parent=5 // pred_check_branch
        %222 = sbr.rel (%p219) target = $region12
      $region11: #{tpu_custom_call.1} parent=5 // pred_region
        %s223 = ssub.s32 %s17, 1
        // Predicated region
        $region13: #{tpu_custom_call.1} parent=11 // pred_check
          %p224 = pneg %p76
        $region14: #{tpu_custom_call.1} parent=11 // pred_check_branch
          %226 = sbr.rel (%p224) target = $region16
        $region15: #{tpu_custom_call.1} parent=11 // pred_region
          _
        $region16: #{tpu_custom_call.1} parent=11 // pred_fallthru
          _
        // Predicated region
        $region17: #{tpu_custom_call.1} parent=11 // pred_check
          %p227 = pneg %p97
        $region18: #{tpu_custom_call.1} parent=11 // pred_check_branch
          %229 = sbr.rel (%p227) target = $region20
        $region19: #{tpu_custom_call.1} parent=11 // pred_region
          _
        $region20: #{tpu_custom_call.1} parent=11 // pred_fallthru
          _
        // Predicated region
        $region21: #{tpu_custom_call.1} parent=11 // pred_check
          %p230 = pneg %p118
        $region22: #{tpu_custom_call.1} parent=11 // pred_check_branch
          %232 = sbr.rel (%p230) target = $region24
        $region23: #{tpu_custom_call.1} parent=11 // pred_region
          %s234 = ssub.s32 9216, 9216
          %235 = vsyncadd [#allocation4], %s234
          %s236 = sshll.u32 [#allocation3], 4
          %s237 = int_to_ptr.vmem [resolvable:$true] %s236
          %242 = dma.hbm_to_vmem [thread:$0]  %s3, 9216, %s237, [#allocation4], 64, 64, 4
        $region24: #{tpu_custom_call.1} parent=11 // pred_fallthru
          _
        // Predicated region
        $region25: #{tpu_custom_call.1} parent=11 // pred_check
          %p243 = pneg %p139
        $region26: #{tpu_custom_call.1} parent=11 // pred_check_branch
          %245 = sbr.rel (%p243) target = $region28
        $region27: #{tpu_custom_call.1} parent=11 // pred_region
          _
        $region28: #{tpu_custom_call.1} parent=11 // pred_fallthru
          _
        // Predicated region
        $region29: #{tpu_custom_call.1} parent=11 // pred_check
          %p246 = pneg %p160
        $region30: #{tpu_custom_call.1} parent=11 // pred_check_branch
          %248 = sbr.rel (%p246) target = $region32
        $region31: #{tpu_custom_call.1} parent=11 // pred_region
          _
        $region32: #{tpu_custom_call.1} parent=11 // pred_fallthru
          _
        // Predicated region
        $region33: #{tpu_custom_call.1} parent=11 // pred_check
          %p249 = pneg %p181
        $region34: #{tpu_custom_call.1} parent=11 // pred_check_branch
          %251 = sbr.rel (%p249) target = $region36
        $region35: #{tpu_custom_call.1} parent=11 // pred_region
          _
        $region36: #{tpu_custom_call.1} parent=11 // pred_fallthru
          _
      $region12: #{tpu_custom_call.1} parent=5 // pred_fallthru
        _
      %p252 = scmp.lt.s32.totalorder %s17, 4
      // Predicated region
      $region37: #{tpu_custom_call.1} parent=5 // pred_check
        %p253 = pneg %p252
      $region38: #{tpu_custom_call.1} parent=5 // pred_check_branch
        %255 = sbr.rel (%p253) target = $region40
      $region39: #{tpu_custom_call.1} parent=5 // pred_region
        // Predicated region
        $region41: #{tpu_custom_call.1} parent=39 // pred_check
          %p256 = pneg %p49
        $region42: #{tpu_custom_call.1} parent=39 // pred_check_branch
          %258 = sbr.rel (%p256) target = $region44
        $region43: #{tpu_custom_call.1} parent=39 // pred_region
          %p259 = scmp.lt.s32.totalorder %s24, 1
          %s260 = scalar_select %p259, %s24, 1
          %s261 = smul.addr %s260, 36
          %s262 = smul.addr %s261, 4
          %s263 = scalar_lea.vmem %s0, %s262
        $region44: #{tpu_custom_call.1} parent=39 // pred_fallthru
          _
      $region40: #{tpu_custom_call.1} parent=5 // pred_fallthru
        _
      %p264 = scmp.le.s32.totalorder 1, %s17
      %p265 = scmp.lt.s32.totalorder %s17, 5
      %p266 = pnand %p264, %p265
      %p267 = pneg %p266
      // Predicated region
      $region45: #{tpu_custom_call.1} parent=5 // pred_check
        _
      $region46: #{tpu_custom_call.1} parent=5 // pred_check_branch
        %269 = sbr.rel (%p266) target = $region48
      $region47: #{tpu_custom_call.1} parent=5 // pred_region
        %s270 = ssub.s32 %s17, 1
        // Predicated region
        $region49: #{tpu_custom_call.1} parent=47 // pred_check
          %p271 = pneg %p118
        $region50: #{tpu_custom_call.1} parent=47 // pred_check_branch
          %273 = sbr.rel (%p271) target = $region52
        $region51: #{tpu_custom_call.1} parent=47 // pred_region
          %274 = dma.done [#allocation4], 9216
        $region52: #{tpu_custom_call.1} parent=47 // pred_fallthru
          _
        %p275 = scmp.lt.s32.totalorder %s26, 1
        %s276 = scalar_select %p275, %s26, 1
        %s277 = smul.addr %s276, 36
        %s278 = smul.addr %s277, 4
        %s279 = scalar_lea.vmem %s0, %s278
        %p280 = pneg %p55
        %p281 = pneg %p52
        %p282 = pneg %p76
        %p283 = pneg %p73
        %p284 = pneg %p97
        %p285 = pneg %p94
        %p286 = pneg %p118
        %p287 = pneg %p115
        %p288 = pneg %p139
        %p289 = pneg %p136
        %p290 = pneg %p160
        %p291 = pneg %p157
        %p292 = pneg %p181
        %p293 = pneg %p178
        %p294 = pneg %p209
        %p295 = pneg %p206
        %s296 = sand.u32 %s196, 1
        %s297 = scalar_lea.sflag [#allocation5], %s296
        %s298 = sand.u32 %s196, 1
        %s299 = smul.addr %s298, 64
        %s300 = scalar_lea.vmem [#allocation6], %s299
        %p301 = scmp.lt.s32.totalorder %s26, 1
        %s302 = scalar_select %p301, %s26, 1
        %s303 = smul.addr %s302, 36
        %s304 = smul.addr %s303, 4
        %s305 = scalar_lea.vmem %s0, %s304
        %s306 = smul.u32 8, %s27
        %s308 = smul.u32 %s27, 8
        %s309 = smul.u32 %s308, 2
        %s310 = smul.addr %s309, 4
        %s311 = scalar_lea.vmem %s305, %s310
        %v312 = vld [vmem:[%s311] sm:$0xf]
        %v313 = vld [vmem:[%s311 + $0x4] sm:$0xf]
        %v314 = vld [vmem:[%s311 + $0x8] sm:$0xf]
        %v315 = vld [vmem:[%s311 + $0xc] sm:$0xf]
        %v316 = vld [vmem:[%s311 + $0x10] sm:$0xf]
        %v317 = vld [vmem:[%s311 + $0x14] sm:$0xf]
        %v318 = vld [vmem:[%s311 + $0x18] sm:$0xf]
        %v319 = vld [vmem:[%s311 + $0x1c] sm:$0xf]
        %v320 = vld [vmem:[%s311 + $0x20] sm:$0xf]
        %v321 = vld [vmem:[%s311 + $0x24] sm:$0xf]
        %v322 = vld [vmem:[%s311 + $0x28] sm:$0xf]
        %v323 = vld [vmem:[%s311 + $0x2c] sm:$0xf]
        %v324 = vld [vmem:[%s311 + $0x30] sm:$0xf]
        %v325 = vld [vmem:[%s311 + $0x34] sm:$0xf]
        %v326 = vld [vmem:[%s311 + $0x38] sm:$0xf]
        %v327 = vld [vmem:[%s311 + $0x3c] sm:$0xf]
        %v328 = vld [vmem:[%s311 + $0x40] sm:$0xf]
        %v329 = vld [vmem:[%s311 + $0x44] sm:$0xf]
        %v330 = vld [vmem:[%s311 + $0x48] sm:$0xf]
        %v331 = vld [vmem:[%s311 + $0x4c] sm:$0xf]
        %v332 = vld [vmem:[%s1] sm:$0xff]
        %v333 = vld [vmem:[%s2] sm:$0x3]
        %v335 = vlaneseq
        %v336 = vshrl.u32 %v335, 7
        %v337 = vsub.s32 0, %v336
        %v338 = vrot.slane %v333, %v337
        %v339 = vlaneseq
        %v340 = vshrl.u32 %v339, 7
        %v341 = vsub.s32 1, %v340
        %v342 = vrot.slane %v333, %v341
        %v365 = vunpack.c.l.b16 %v312
        %v366 = vunpack.c.l.b16 %v313
        %v367 = vunpack.c.l.b16 %v314
        %v368 = vunpack.c.l.b16 %v315
        %v369 = vunpack.c.l.b16 %v316
        %v370 = vunpack.c.l.b16 %v317
        %v371 = vunpack.c.l.b16 %v318
        %v372 = vunpack.c.l.b16 %v319
        %v373 = vunpack.c.l.b16 %v320
        %v374 = vunpack.c.l.b16 %v321
        %v375 = vunpack.c.l.b16 %v322
        %v376 = vunpack.c.l.b16 %v323
        %v377 = vunpack.c.l.b16 %v324
        %v378 = vunpack.c.l.b16 %v325
        %v379 = vunpack.c.l.b16 %v326
        %v380 = vunpack.c.l.b16 %v327
        %v381 = vunpack.c.l.b16 %v328
        %v382 = vunpack.c.l.b16 %v329
        %v383 = vunpack.c.l.b16 %v330
        %v384 = vunpack.c.l.b16 %v331
        %v385 = vpack.c.b16 %v366, %v365
        %v386 = vpack.c.b16 %v368, %v367
        %v387 = vpack.c.b16 %v370, %v369
        %v388 = vpack.c.b16 %v372, %v371
        %v389 = vpack.c.b16 %v374, %v373
        %v390 = vpack.c.b16 %v376, %v375
        %v391 = vpack.c.b16 %v378, %v377
        %v392 = vpack.c.b16 %v380, %v379
        %v393 = vpack.c.b16 %v382, %v381
        %v394 = vpack.c.b16 %v384, %v383
        %v396 = vunpack.c.l.b16 %v332
        %v397 = vunpack.c.h.b16 %v332
        %v398 = vpack.c.b16 %v396, %v396
        %v399 = vpack.c.b16 %v397, %v397
        %vm400 = vcmask 64512
        %v402 = vsel %vm400, %v385, 0
        %v405 = vsel %vm400, %v386, 0
        %v408 = vsel %vm400, %v387, 0
        %v411 = vsel %vm400, %v388, 0
        %v414 = vsel %vm400, %v389, 0
        %v417 = vsel %vm400, %v390, 0
        %v420 = vsel %vm400, %v391, 0
        %v423 = vsel %vm400, %v392, 0
        %v426 = vsel %vm400, %v393, 0
        %v429 = vsel %vm400, %v394, 0
        %vm431 = vcmask 1043456
        %v433 = vsel %vm431, %v398, 0
        %v436 = vsel %vm431, %v399, 0
        %438 = vmatprep.subr.bf16.mxu0 %v436
        %439 = vmatpush1.bf16.msra.mxu0 %v433
        %440 = vmatprep.subr.bf16.mxu0 0
        %441 = vmatpush1.bf16.msra.mxu0 0
        %442 = vmatprep.subr.bf16.mxu0 0
        %443 = vmatpush1.bf16.msra.mxu0 0
        %444 = vmatprep.subr.bf16.mxu0 0
        %445 = vmatpush1.bf16.msra.mxu0 0
        %446 = vmatprep.subr.bf16.mxu0 0
        %447 = vmatpush1.bf16.msra.mxu0 0
        %448 = vmatprep.subr.bf16.mxu0 0
        %449 = vmatpush1.bf16.msra.mxu0 0
        %450 = vmatprep.subr.bf16.mxu0 0
        %451 = vmatpush1.bf16.msra.mxu0 0
        %452 = vmatprep.subr.bf16.mxu0 0
        %453 = vmatpush1.bf16.msra.mxu0 0
        %454 = vmatprep.subr.bf16.mxu0 0
        %455 = vmatpush1.bf16.msra.mxu0 0
        %456 = vmatprep.subr.bf16.mxu0 0
        %457 = vmatpush1.bf16.msra.mxu0 0
        %458 = vmatprep.subr.bf16.mxu0 0
        %459 = vmatpush1.bf16.msra.mxu0 0
        %460 = vmatprep.subr.bf16.mxu0 0
        %461 = vmatpush1.bf16.msra.mxu0 0
        %462 = vmatprep.subr.bf16.mxu0 0
        %463 = vmatpush1.bf16.msra.mxu0 0
        %464 = vmatprep.subr.bf16.mxu0 0
        %465 = vmatpush1.bf16.msra.mxu0 0
        %466 = vmatprep.subr.bf16.mxu0 0
        %467 = vmatpush1.bf16.msra.mxu0 0
        %468 = vmatprep.subr.bf16.mxu0 0
        %469 = vmatpush1.bf16.msra.mxu0 0
        %470 = vmatprep.mubr.bf16.mxu0 0
        %471 = vmatmul.mubr.bf16.gmra.mrb[0].mxu0 %v402
        %v472 = vpop.f32.mrb[0].mxu0
        %v473 = vpop.f32.mrb[0].mxu0
        %v474 = vadd.f32 %v342, %v473
        %v475 = vpop.f32.mrb[0].mxu0
        %v476 = vpop.f32.mrb[0].mxu0
        %v477 = vadd.f32 %v342, %v476
        %478 = vmatprep.mubr.bf16.mxu0 0
        %479 = vmatmul.mubr.bf16.gmra.mrb[0].mxu0 %v405
        %v480 = vpop.f32.mrb[0].mxu0
        %v481 = vadd.f32 %v338, %v480
        %v482 = vpop.f32.mrb[0].mxu0
        %v483 = vadd.f32 %v342, %v482
        %v484 = vpop.f32.mrb[0].mxu0
        %v485 = vadd.f32 %v338, %v484
        %v486 = vpop.f32.mrb[0].mxu0
        %v487 = vadd.f32 %v342, %v486
        %488 = vmatprep.mubr.bf16.mxu0 0
        %489 = vmatmul.mubr.bf16.gmra.mrb[0].mxu0 %v408
        %v490 = vpop.f32.mrb[0].mxu0
        %v491 = vadd.f32 %v338, %v490
        %v492 = vpop.f32.mrb[0].mxu0
        %v493 = vadd.f32 %v342, %v492
        %v494 = vpop.f32.mrb[0].mxu0
        %v495 = vadd.f32 %v338, %v494
        %v496 = vpop.f32.mrb[0].mxu0
        %v497 = vadd.f32 %v342, %v496
        %498 = vmatprep.mubr.bf16.mxu0 0
        %499 = vmatmul.mubr.bf16.gmra.mrb[0].mxu0 %v411
        %v500 = vpop.f32.mrb[0].mxu0
        %v501 = vadd.f32 %v338, %v500
        %v502 = vpop.f32.mrb[0].mxu0
        %v503 = vadd.f32 %v342, %v502
        %v504 = vpop.f32.mrb[0].mxu0
        %v505 = vadd.f32 %v338, %v504
        %v506 = vpop.f32.mrb[0].mxu0
        %v507 = vadd.f32 %v342, %v506
        %508 = vmatprep.mubr.bf16.mxu0 0
        %509 = vmatmul.mubr.bf16.gmra.mrb[0].mxu0 %v414
        %v510 = vpop.f32.mrb[0].mxu0
        %v511 = vadd.f32 %v338, %v510
        %v512 = vpop.f32.mrb[0].mxu0
        %v513 = vadd.f32 %v342, %v512
        %v514 = vpop.f32.mrb[0].mxu0
        %v515 = vadd.f32 %v338, %v514
        %v516 = vpop.f32.mrb[0].mxu0
        %v517 = vadd.f32 %v342, %v516
        %518 = vmatprep.mubr.bf16.mxu0 0
        %519 = vmatmul.mubr.bf16.gmra.mrb[0].mxu0 %v417
        %v520 = vpop.f32.mrb[0].mxu0
        %v521 = vadd.f32 %v338, %v520
        %v522 = vpop.f32.mrb[0].mxu0
        %v523 = vadd.f32 %v342, %v522
        %v524 = vpop.f32.mrb[0].mxu0
        %v525 = vadd.f32 %v338, %v524
        %v526 = vpop.f32.mrb[0].mxu0
        %v527 = vadd.f32 %v342, %v526
        %528 = vmatprep.mubr.bf16.mxu0 0
        %529 = vmatmul.mubr.bf16.gmra.mrb[0].mxu0 %v420
        %v530 = vpop.f32.mrb[0].mxu0
        %v531 = vadd.f32 %v338, %v530
        %v532 = vpop.f32.mrb[0].mxu0
        %v533 = vadd.f32 %v342, %v532
        %v534 = vpop.f32.mrb[0].mxu0
        %v535 = vadd.f32 %v338, %v534
        %v536 = vpop.f32.mrb[0].mxu0
        %v537 = vadd.f32 %v342, %v536
        %538 = vmatprep.mubr.bf16.mxu0 0
        %539 = vmatmul.mubr.bf16.gmra.mrb[0].mxu0 %v423
        %v540 = vpop.f32.mrb[0].mxu0
        %v541 = vadd.f32 %v338, %v540
        %v542 = vpop.f32.mrb[0].mxu0
        %v543 = vadd.f32 %v342, %v542
        %v544 = vpop.f32.mrb[0].mxu0
        %v545 = vadd.f32 %v338, %v544
        %v546 = vpop.f32.mrb[0].mxu0
        %v547 = vadd.f32 %v342, %v546
        %548 = vmatprep.mubr.bf16.mxu0 0
        %549 = vmatmul.mubr.bf16.gmra.mrb[0].mxu0 %v426
        %v550 = vpop.f32.mrb[0].mxu0
        %v551 = vadd.f32 %v338, %v550
        %v552 = vpop.f32.mrb[0].mxu0
        %v553 = vadd.f32 %v342, %v552
        %v554 = vpop.f32.mrb[0].mxu0
        %v555 = vadd.f32 %v338, %v554
        %v556 = vpop.f32.mrb[0].mxu0
        %v557 = vadd.f32 %v342, %v556
        %558 = vmatprep.mubr.bf16.mxu0 0
        %559 = vmatmul.mubr.bf16.gmra.mrb[0].mxu0 %v429
        %v560 = vpop.f32.mrb[0].mxu0
        %v561 = vpop.f32.mrb[0].mxu0
        %v562 = vadd.f32 %v342, %v561
        %v563 = vpop.f32.mrb[0].mxu0
        %v564 = vpop.f32.mrb[0].mxu0
        %v565 = vadd.f32 %v342, %v564
        %566 = vdwg.mxu0
        %v567 = vmax.f32 %v474, 0.0
        %v568 = vmax.f32 %v477, 0.0
        %v569 = vmax.f32 %v481, 0.0
        %v570 = vmax.f32 %v483, 0.0
        %v571 = vmax.f32 %v485, 0.0
        %v572 = vmax.f32 %v487, 0.0
        %v573 = vmax.f32 %v491, 0.0
        %v574 = vmax.f32 %v493, 0.0
        %v575 = vmax.f32 %v495, 0.0
        %v576 = vmax.f32 %v497, 0.0
        %v577 = vmax.f32 %v501, 0.0
        %v578 = vmax.f32 %v503, 0.0
        %v579 = vmax.f32 %v505, 0.0
        %v580 = vmax.f32 %v507, 0.0
        %v581 = vmax.f32 %v511, 0.0
        %v582 = vmax.f32 %v513, 0.0
        %v583 = vmax.f32 %v515, 0.0
        %v584 = vmax.f32 %v517, 0.0
        %v585 = vmax.f32 %v521, 0.0
        %v586 = vmax.f32 %v523, 0.0
        %v587 = vmax.f32 %v525, 0.0
        %v588 = vmax.f32 %v527, 0.0
        %v589 = vmax.f32 %v531, 0.0
        %v590 = vmax.f32 %v533, 0.0
        %v591 = vmax.f32 %v535, 0.0
        %v592 = vmax.f32 %v537, 0.0
        %v593 = vmax.f32 %v541, 0.0
        %v594 = vmax.f32 %v543, 0.0
        %v595 = vmax.f32 %v545, 0.0
        %v596 = vmax.f32 %v547, 0.0
        %v597 = vmax.f32 %v551, 0.0
        %v598 = vmax.f32 %v553, 0.0
        %v599 = vmax.f32 %v555, 0.0
        %v600 = vmax.f32 %v557, 0.0
        %v601 = vmax.f32 %v562, 0.0
        %v602 = vmax.f32 %v565, 0.0
        %v603 = vpack.c.bf16 %v571, %v569
        %v604 = vpack.c.bf16 %v575, %v573
        %v605 = vpack.c.bf16 %v579, %v577
        %v606 = vpack.c.bf16 %v583, %v581
        %v607 = vpack.c.bf16 %v587, %v585
        %v608 = vpack.c.bf16 %v591, %v589
        %v609 = vpack.c.bf16 %v595, %v593
        %v610 = vpack.c.bf16 %v599, %v597
        %v619 = vunpack.c.l.b16 %v603
        %v620 = vunpack.c.h.b16 %v603
        %v621 = vunpack.c.l.b16 %v604
        %v622 = vunpack.c.h.b16 %v604
        %v623 = vunpack.c.l.b16 %v605
        %v624 = vunpack.c.h.b16 %v605
        %v625 = vunpack.c.l.b16 %v606
        %v626 = vunpack.c.h.b16 %v606
        %v627 = vunpack.c.l.b16 %v607
        %v628 = vunpack.c.h.b16 %v607
        %v629 = vunpack.c.l.b16 %v608
        %v630 = vunpack.c.h.b16 %v608
        %v631 = vunpack.c.l.b16 %v609
        %v632 = vunpack.c.h.b16 %v609
        %v633 = vunpack.c.l.b16 %v610
        %v634 = vunpack.c.h.b16 %v610
        %v635 = vpack.c.b16 %v619, %v619
        %v636 = vpack.c.b16 %v620, %v620
        %v637 = vpack.c.b16 %v621, %v621
        %v638 = vpack.c.b16 %v622, %v622
        %v639 = vpack.c.b16 %v623, %v623
        %v640 = vpack.c.b16 %v624, %v624
        %v641 = vpack.c.b16 %v625, %v625
        %v642 = vpack.c.b16 %v626, %v626
        %v643 = vpack.c.b16 %v627, %v627
        %v644 = vpack.c.b16 %v628, %v628
        %v645 = vpack.c.b16 %v629, %v629
        %v646 = vpack.c.b16 %v630, %v630
        %v647 = vpack.c.b16 %v631, %v631
        %v648 = vpack.c.b16 %v632, %v632
        %v649 = vpack.c.b16 %v633, %v633
        %v650 = vpack.c.b16 %v634, %v634
        %667 = vst [vmem:[%s300] sm:$0xf] %v635
        %668 = vst [vmem:[%s300 + $0x4] sm:$0xf] %v636
        %669 = vst [vmem:[%s300 + $0x8] sm:$0xf] %v637
        %670 = vst [vmem:[%s300 + $0xc] sm:$0xf] %v638
        %671 = vst [vmem:[%s300 + $0x10] sm:$0xf] %v639
        %672 = vst [vmem:[%s300 + $0x14] sm:$0xf] %v640
        %673 = vst [vmem:[%s300 + $0x18] sm:$0xf] %v641
        %674 = vst [vmem:[%s300 + $0x1c] sm:$0xf] %v642
        %675 = vst [vmem:[%s300 + $0x20] sm:$0xf] %v643
        %676 = vst [vmem:[%s300 + $0x24] sm:$0xf] %v644
        %677 = vst [vmem:[%s300 + $0x28] sm:$0xf] %v645
        %678 = vst [vmem:[%s300 + $0x2c] sm:$0xf] %v646
        %679 = vst [vmem:[%s300 + $0x30] sm:$0xf] %v647
        %680 = vst [vmem:[%s300 + $0x34] sm:$0xf] %v648
        %681 = vst [vmem:[%s300 + $0x38] sm:$0xf] %v649
        %682 = vst [vmem:[%s300 + $0x3c] sm:$0xf] %v650
        %683 = vst [vmem:[#allocation2] sm:$0xff] %v567
        %684 = vst [vmem:[#allocation2 + $0x8] sm:$0xff] %v568
        %685 = vst [vmem:[#allocation2 + $0x10] sm:$0xff] %v570
        %686 = vst [vmem:[#allocation2 + $0x18] sm:$0xff] %v572
        %687 = vst [vmem:[#allocation2 + $0x20] sm:$0xff] %v574
        %688 = vst [vmem:[#allocation2 + $0x28] sm:$0xff] %v576
        %689 = vst [vmem:[#allocation2 + $0x30] sm:$0xff] %v578
        %690 = vst [vmem:[#allocation2 + $0x38] sm:$0xff] %v580
        %691 = vst [vmem:[#allocation2 + $0x40] sm:$0xff] %v582
        %692 = vst [vmem:[#allocation2 + $0x48] sm:$0xff] %v584
        %693 = vst [vmem:[#allocation2 + $0x50] sm:$0xff] %v586
        %694 = vst [vmem:[#allocation2 + $0x58] sm:$0xff] %v588
        %695 = vst [vmem:[#allocation2 + $0x60] sm:$0xff] %v590
        %696 = vst [vmem:[#allocation2 + $0x68] sm:$0xff] %v592
        %697 = vst [vmem:[#allocation2 + $0x70] sm:$0xff] %v594
        %698 = vst [vmem:[#allocation2 + $0x78] sm:$0xff] %v596
        %699 = vst [vmem:[#allocation2 + $0x80] sm:$0xff] %v598
        %700 = vst [vmem:[#allocation2 + $0x88] sm:$0xff] %v600
        %701 = vst [vmem:[#allocation2 + $0x90] sm:$0xff] %v601
        %702 = vst [vmem:[#allocation2 + $0x98] sm:$0xff] %v602
        %p703 = scmp.eq.s32.totalorder %s27, 0
        // Predicated region
        $region53: #{tpu_custom_call.1} parent=47 // pred_check
          %p704 = pneg %p703
        $region54: #{tpu_custom_call.1} parent=47 // pred_check_branch
          %706 = sbr.rel (%p704) target = $region56
        $region55: #{tpu_custom_call.1} parent=47 // pred_region
          %707 = vst [vmem:[#allocation2] sm:$0xff] 0.0
          %708 = vst [vmem:[#allocation2 + $0x8] sm:$0xff] 0.0
        $region56: #{tpu_custom_call.1} parent=47 // pred_fallthru
          _
        %p709 = scmp.eq.s32.totalorder %s27, 1
        // Predicated region
        $region57: #{tpu_custom_call.1} parent=47 // pred_check
          %p710 = pneg %p709
        $region58: #{tpu_custom_call.1} parent=47 // pred_check_branch
          %712 = sbr.rel (%p710) target = $region60
        $region59: #{tpu_custom_call.1} parent=47 // pred_region
          %s713 = scalar_lea.vmem [#allocation2], 144
          %714 = vst [vmem:[%s713] sm:$0xff] 0.0
          %715 = vst [vmem:[%s713 + $0x8] sm:$0xff] 0.0
        $region60: #{tpu_custom_call.1} parent=47 // pred_fallthru
          _
        %v716 = vlaneseq
        %v717 = vshrl.u32 %v716, 7
        %v718 = vadd.s32 %v717, 8
        %vm719 = vcmp.lt.s32.totalorder %v717, 1
        %vm720 = vcmp.lt.s32.totalorder %v718, 1
        %vm721 = vcmp.ge.s32.totalorder %v717, 15
        %vm722 = vcmp.ge.s32.totalorder %v718, 15
        %v723 = vld [vmem:[#allocation2] sm:$0xff]
        %v724 = vld [vmem:[#allocation2 + $0x8] sm:$0xff]
        %v725 = vld [vmem:[#allocation2 + $0x10] sm:$0xff]
        %v726 = vld [vmem:[#allocation2 + $0x18] sm:$0xff]
        %v727 = vld [vmem:[#allocation2 + $0x20] sm:$0xff]
        %v728 = vld [vmem:[#allocation2 + $0x28] sm:$0xff]
        %v729 = vld [vmem:[#allocation2 + $0x30] sm:$0xff]
        %v730 = vld [vmem:[#allocation2 + $0x38] sm:$0xff]
        %v731 = vld [vmem:[#allocation2 + $0x40] sm:$0xff]
        %v732 = vld [vmem:[#allocation2 + $0x48] sm:$0xff]
        %v733 = vld [vmem:[#allocation2 + $0x50] sm:$0xff]
        %v734 = vld [vmem:[#allocation2 + $0x58] sm:$0xff]
        %v735 = vld [vmem:[#allocation2 + $0x60] sm:$0xff]
        %v736 = vld [vmem:[#allocation2 + $0x68] sm:$0xff]
        %v737 = vld [vmem:[#allocation2 + $0x70] sm:$0xff]
        %v738 = vld [vmem:[#allocation2 + $0x78] sm:$0xff]
        %v739 = vrot.slane %v723, 7
        %v740 = vrot.slane %v725, 7
        %v741 = vrot.slane %v727, 7
        %v742 = vrot.slane %v729, 7
        %v743 = vrot.slane %v731, 7
        %v744 = vrot.slane %v733, 7
        %v745 = vrot.slane %v735, 7
        %v746 = vrot.slane %v737, 7
        %v747 = vrot.slane %v724, 7
        %v748 = vrot.slane %v726, 7
        %v749 = vrot.slane %v728, 7
        %v750 = vrot.slane %v730, 7
        %v751 = vrot.slane %v732, 7
        %v752 = vrot.slane %v734, 7
        %v753 = vrot.slane %v736, 7
        %v754 = vrot.slane %v738, 7
        %v755 = vsel %vm719, %v739, %v747
        %v756 = vsel %vm719, %v740, %v748
        %v757 = vsel %vm719, %v741, %v749
        %v758 = vsel %vm719, %v742, %v750
        %v759 = vsel %vm719, %v743, %v751
        %v760 = vsel %vm719, %v744, %v752
        %v761 = vsel %vm719, %v745, %v753
        %v762 = vsel %vm719, %v746, %v754
        %v763 = vsel %vm719, %v747, %v739
        %v764 = vsel %vm719, %v748, %v740
        %v765 = vsel %vm719, %v749, %v741
        %v766 = vsel %vm719, %v750, %v742
        %v767 = vsel %vm719, %v751, %v743
        %v768 = vsel %vm719, %v752, %v744
        %v769 = vsel %vm719, %v753, %v745
        %v770 = vsel %vm719, %v754, %v746
        %v771 = vsel %vm719, 0.0, %v763
        %v772 = vsel %vm720, 0.0, %v755
        %v773 = vsel %vm719, 0.0, %v764
        %v774 = vsel %vm720, 0.0, %v756
        %v775 = vsel %vm719, 0.0, %v765
        %v776 = vsel %vm720, 0.0, %v757
        %v777 = vsel %vm719, 0.0, %v766
        %v778 = vsel %vm720, 0.0, %v758
        %v779 = vsel %vm719, 0.0, %v767
        %v780 = vsel %vm720, 0.0, %v759
        %v781 = vsel %vm719, 0.0, %v768
        %v782 = vsel %vm720, 0.0, %v760
        %v783 = vsel %vm719, 0.0, %v769
        %v784 = vsel %vm720, 0.0, %v761
        %v785 = vsel %vm719, 0.0, %v770
        %v786 = vsel %vm720, 0.0, %v762
        %v787 = vrot.slane %v723, 1
        %v788 = vrot.slane %v725, 1
        %v789 = vrot.slane %v727, 1
        %v790 = vrot.slane %v729, 1
        %v791 = vrot.slane %v731, 1
        %v792 = vrot.slane %v733, 1
        %v793 = vrot.slane %v735, 1
        %v794 = vrot.slane %v737, 1
        %v795 = vrot.slane %v724, 1
        %v796 = vrot.slane %v726, 1
        %v797 = vrot.slane %v728, 1
        %v798 = vrot.slane %v730, 1
        %v799 = vrot.slane %v732, 1
        %v800 = vrot.slane %v734, 1
        %v801 = vrot.slane %v736, 1
        %v802 = vrot.slane %v738, 1
        %vm803 = vcmp.lt.s32.totalorder %v717, 7
        %v804 = vsel %vm803, %v787, %v795
        %v805 = vsel %vm803, %v788, %v796
        %v806 = vsel %vm803, %v789, %v797
        %v807 = vsel %vm803, %v790, %v798
        %v808 = vsel %vm803, %v791, %v799
        %v809 = vsel %vm803, %v792, %v800
        %v810 = vsel %vm803, %v793, %v801
        %v811 = vsel %vm803, %v794, %v802
        %v812 = vsel %vm803, %v795, %v787
        %v813 = vsel %vm803, %v796, %v788
        %v814 = vsel %vm803, %v797, %v789
        %v815 = vsel %vm803, %v798, %v790
        %v816 = vsel %vm803, %v799, %v791
        %v817 = vsel %vm803, %v800, %v792
        %v818 = vsel %vm803, %v801, %v793
        %v819 = vsel %vm803, %v802, %v794
        %v820 = vsel %vm721, 0.0, %v804
        %v821 = vsel %vm722, 0.0, %v812
        %v822 = vsel %vm721, 0.0, %v805
        %v823 = vsel %vm722, 0.0, %v813
        %v824 = vsel %vm721, 0.0, %v806
        %v825 = vsel %vm722, 0.0, %v814
        %v826 = vsel %vm721, 0.0, %v807
        %v827 = vsel %vm722, 0.0, %v815
        %v828 = vsel %vm721, 0.0, %v808
        %v829 = vsel %vm722, 0.0, %v816
        %v830 = vsel %vm721, 0.0, %v809
        %v831 = vsel %vm722, 0.0, %v817
        %v832 = vsel %vm721, 0.0, %v810
        %v833 = vsel %vm722, 0.0, %v818
        %v834 = vsel %vm721, 0.0, %v811
        %v835 = vsel %vm722, 0.0, %v819
        %v836 = vpack.c.bf16 %v772, %v771
        %v837 = vpack.c.bf16 %v724, %v723
        %v838 = vpack.c.bf16 %v821, %v820
        %v839 = vpack.c.bf16 %v774, %v773
        %v840 = vpack.c.bf16 %v726, %v725
        %v841 = vpack.c.bf16 %v823, %v822
        %v842 = vpack.c.bf16 %v776, %v775
        %v843 = vpack.c.bf16 %v728, %v727
        %v844 = vpack.c.bf16 %v825, %v824
        %v845 = vpack.c.bf16 %v778, %v777
        %v846 = vpack.c.bf16 %v730, %v729
        %v847 = vpack.c.bf16 %v827, %v826
        %v848 = vpack.c.bf16 %v780, %v779
        %v849 = vpack.c.bf16 %v732, %v731
        %v850 = vpack.c.bf16 %v829, %v828
        %v851 = vpack.c.bf16 %v782, %v781
        %v852 = vpack.c.bf16 %v734, %v733
        %v853 = vpack.c.bf16 %v831, %v830
        %v854 = vpack.c.bf16 %v784, %v783
        %v855 = vpack.c.bf16 %v736, %v735
        %v856 = vpack.c.bf16 %v833, %v832
        %v857 = vpack.c.bf16 %v786, %v785
        %v858 = vpack.c.bf16 %v738, %v737
        %v859 = vpack.c.bf16 %v835, %v834
        %v860 = vld [vmem:[#allocation3] sm:$0xf]
        %v861 = vld [vmem:[#allocation3 + $0x4] sm:$0xf]
        %v862 = vld [vmem:[#allocation3 + $0x8] sm:$0xf]
        %v863 = vld [vmem:[#allocation3 + $0xc] sm:$0xf]
        %v864 = vld [vmem:[#allocation3 + $0x10] sm:$0xf]
        %v865 = vld [vmem:[#allocation3 + $0x14] sm:$0xf]
        %v866 = vld [vmem:[#allocation3 + $0x18] sm:$0xf]
        %v867 = vld [vmem:[#allocation3 + $0x1c] sm:$0xf]
        %v868 = vld [vmem:[#allocation3 + $0x20] sm:$0xf]
        %v869 = vld [vmem:[#allocation3 + $0x24] sm:$0xf]
        %v870 = vld [vmem:[#allocation3 + $0x28] sm:$0xf]
        %v871 = vld [vmem:[#allocation3 + $0x2c] sm:$0xf]
        %v872 = vld [vmem:[#allocation3 + $0x30] sm:$0xf]
        %v873 = vld [vmem:[#allocation3 + $0x34] sm:$0xf]
        %v874 = vld [vmem:[#allocation3 + $0x38] sm:$0xf]
        %v875 = vld [vmem:[#allocation3 + $0x3c] sm:$0xf]
        %v876 = vld [vmem:[#allocation3 + $0x40] sm:$0xf]
        %v877 = vld [vmem:[#allocation3 + $0x44] sm:$0xf]
        %v878 = vld [vmem:[#allocation3 + $0x48] sm:$0xf]
        %v879 = vld [vmem:[#allocation3 + $0x4c] sm:$0xf]
        %v880 = vld [vmem:[#allocation3 + $0x50] sm:$0xf]
        %v881 = vld [vmem:[#allocation3 + $0x54] sm:$0xf]
        %v882 = vld [vmem:[#allocation3 + $0x58] sm:$0xf]
        %v883 = vld [vmem:[#allocation3 + $0x5c] sm:$0xf]
        %v884 = vld [vmem:[#allocation3 + $0x60] sm:$0xf]
        %v885 = vld [vmem:[#allocation3 + $0x64] sm:$0xf]
        %v886 = vld [vmem:[#allocation3 + $0x68] sm:$0xf]
        %v887 = vld [vmem:[#allocation3 + $0x6c] sm:$0xf]
        %v888 = vld [vmem:[#allocation3 + $0x70] sm:$0xf]
        %v889 = vld [vmem:[#allocation3 + $0x74] sm:$0xf]
        %v890 = vld [vmem:[#allocation3 + $0x78] sm:$0xf]
        %v891 = vld [vmem:[#allocation3 + $0x7c] sm:$0xf]
        %v892 = vld [vmem:[#allocation3 + $0x80] sm:$0xf]
        %v893 = vld [vmem:[#allocation3 + $0x84] sm:$0xf]
        %v894 = vld [vmem:[#allocation3 + $0x88] sm:$0xf]
        %v895 = vld [vmem:[#allocation3 + $0x8c] sm:$0xf]
        %v896 = vld [vmem:[#allocation3 + $0x90] sm:$0xf]
        %v897 = vld [vmem:[#allocation3 + $0x94] sm:$0xf]
        %v898 = vld [vmem:[#allocation3 + $0x98] sm:$0xf]
        %v899 = vld [vmem:[#allocation3 + $0x9c] sm:$0xf]
        %v900 = vld [vmem:[#allocation3 + $0xa0] sm:$0xf]
        %v901 = vld [vmem:[#allocation3 + $0xa4] sm:$0xf]
        %v902 = vld [vmem:[#allocation3 + $0xa8] sm:$0xf]
        %v903 = vld [vmem:[#allocation3 + $0xac] sm:$0xf]
        %v904 = vld [vmem:[#allocation3 + $0xb0] sm:$0xf]
        %v905 = vld [vmem:[#allocation3 + $0xb4] sm:$0xf]
        %v906 = vld [vmem:[#allocation3 + $0xb8] sm:$0xf]
        %v907 = vld [vmem:[#allocation3 + $0xbc] sm:$0xf]
        %s908 = scalar_lea.vmem [#allocation2], 16
        %v909 = vld [vmem:[%s908] sm:$0xff]
        %v910 = vld [vmem:[%s908 + $0x8] sm:$0xff]
        %v911 = vld [vmem:[%s908 + $0x10] sm:$0xff]
        %v912 = vld [vmem:[%s908 + $0x18] sm:$0xff]
        %v913 = vld [vmem:[%s908 + $0x20] sm:$0xff]
        %v914 = vld [vmem:[%s908 + $0x28] sm:$0xff]
        %v915 = vld [vmem:[%s908 + $0x30] sm:$0xff]
        %v916 = vld [vmem:[%s908 + $0x38] sm:$0xff]
        %v917 = vld [vmem:[%s908 + $0x40] sm:$0xff]
        %v918 = vld [vmem:[%s908 + $0x48] sm:$0xff]
        %v919 = vld [vmem:[%s908 + $0x50] sm:$0xff]
        %v920 = vld [vmem:[%s908 + $0x58] sm:$0xff]
        %v921 = vld [vmem:[%s908 + $0x60] sm:$0xff]
        %v922 = vld [vmem:[%s908 + $0x68] sm:$0xff]
        %v923 = vld [vmem:[%s908 + $0x70] sm:$0xff]
        %v924 = vld [vmem:[%s908 + $0x78] sm:$0xff]
        %v925 = vrot.slane %v909, 7
        %v926 = vrot.slane %v911, 7
        %v927 = vrot.slane %v913, 7
        %v928 = vrot.slane %v915, 7
        %v929 = vrot.slane %v917, 7
        %v930 = vrot.slane %v919, 7
        %v931 = vrot.slane %v921, 7
        %v932 = vrot.slane %v923, 7
        %v933 = vrot.slane %v910, 7
        %v934 = vrot.slane %v912, 7
        %v935 = vrot.slane %v914, 7
        %v936 = vrot.slane %v916, 7
        %v937 = vrot.slane %v918, 7
        %v938 = vrot.slane %v920, 7
        %v939 = vrot.slane %v922, 7
        %v940 = vrot.slane %v924, 7
        %v941 = vsel %vm719, %v925, %v933
        %v942 = vsel %vm719, %v926, %v934
        %v943 = vsel %vm719, %v927, %v935
        %v944 = vsel %vm719, %v928, %v936
        %v945 = vsel %vm719, %v929, %v937
        %v946 = vsel %vm719, %v930, %v938
        %v947 = vsel %vm719, %v931, %v939
        %v948 = vsel %vm719, %v932, %v940
        %v949 = vsel %vm719, %v933, %v925
        %v950 = vsel %vm719, %v934, %v926
        %v951 = vsel %vm719, %v935, %v927
        %v952 = vsel %vm719, %v936, %v928
        %v953 = vsel %vm719, %v937, %v929
        %v954 = vsel %vm719, %v938, %v930
        %v955 = vsel %vm719, %v939, %v931
        %v956 = vsel %vm719, %v940, %v932
        %v957 = vsel %vm719, 0.0, %v949
        %v958 = vsel %vm720, 0.0, %v941
        %v959 = vsel %vm719, 0.0, %v950
        %v960 = vsel %vm720, 0.0, %v942
        %v961 = vsel %vm719, 0.0, %v951
        %v962 = vsel %vm720, 0.0, %v943
        %v963 = vsel %vm719, 0.0, %v952
        %v964 = vsel %vm720, 0.0, %v944
        %v965 = vsel %vm719, 0.0, %v953
        %v966 = vsel %vm720, 0.0, %v945
        %v967 = vsel %vm719, 0.0, %v954
        %v968 = vsel %vm720, 0.0, %v946
        %v969 = vsel %vm719, 0.0, %v955
        %v970 = vsel %vm720, 0.0, %v947
        %v971 = vsel %vm719, 0.0, %v956
        %v972 = vsel %vm720, 0.0, %v948
        %v973 = vrot.slane %v909, 1
        %v974 = vrot.slane %v911, 1
        %v975 = vrot.slane %v913, 1
        %v976 = vrot.slane %v915, 1
        %v977 = vrot.slane %v917, 1
        %v978 = vrot.slane %v919, 1
        %v979 = vrot.slane %v921, 1
        %v980 = vrot.slane %v923, 1
        %v981 = vrot.slane %v910, 1
        %v982 = vrot.slane %v912, 1
        %v983 = vrot.slane %v914, 1
        %v984 = vrot.slane %v916, 1
        %v985 = vrot.slane %v918, 1
        %v986 = vrot.slane %v920, 1
        %v987 = vrot.slane %v922, 1
        %v988 = vrot.slane %v924, 1
        %v989 = vsel %vm803, %v973, %v981
        %v990 = vsel %vm803, %v974, %v982
        %v991 = vsel %vm803, %v975, %v983
        %v992 = vsel %vm803, %v976, %v984
        %v993 = vsel %vm803, %v977, %v985
        %v994 = vsel %vm803, %v978, %v986
        %v995 = vsel %vm803, %v979, %v987
        %v996 = vsel %vm803, %v980, %v988
        %v997 = vsel %vm803, %v981, %v973
        %v998 = vsel %vm803, %v982, %v974
        %v999 = vsel %vm803, %v983, %v975
        %v1000 = vsel %vm803, %v984, %v976
        %v1001 = vsel %vm803, %v985, %v977
        %v1002 = vsel %vm803, %v986, %v978
        %v1003 = vsel %vm803, %v987, %v979
        %v1004 = vsel %vm803, %v988, %v980
        %v1005 = vsel %vm721, 0.0, %v989
        %v1006 = vsel %vm722, 0.0, %v997
        %v1007 = vsel %vm721, 0.0, %v990
        %v1008 = vsel %vm722, 0.0, %v998
        %v1009 = vsel %vm721, 0.0, %v991
        %v1010 = vsel %vm722, 0.0, %v999
        %v1011 = vsel %vm721, 0.0, %v992
        %v1012 = vsel %vm722, 0.0, %v1000
        %v1013 = vsel %vm721, 0.0, %v993
        %v1014 = vsel %vm722, 0.0, %v1001
        %v1015 = vsel %vm721, 0.0, %v994
        %v1016 = vsel %vm722, 0.0, %v1002
        %v1017 = vsel %vm721, 0.0, %v995
        %v1018 = vsel %vm722, 0.0, %v1003
        %v1019 = vsel %vm721, 0.0, %v996
        %v1020 = vsel %vm722, 0.0, %v1004
        %v1021 = vpack.c.bf16 %v958, %v957
        %v1022 = vpack.c.bf16 %v910, %v909
        %v1023 = vpack.c.bf16 %v1006, %v1005
        %v1024 = vpack.c.bf16 %v960, %v959
        %v1025 = vpack.c.bf16 %v912, %v911
        %v1026 = vpack.c.bf16 %v1008, %v1007
        %v1027 = vpack.c.bf16 %v962, %v961
        %v1028 = vpack.c.bf16 %v914, %v913
        %v1029 = vpack.c.bf16 %v1010, %v1009
        %v1030 = vpack.c.bf16 %v964, %v963
        %v1031 = vpack.c.bf16 %v916, %v915
        %v1032 = vpack.c.bf16 %v1012, %v1011
        %v1033 = vpack.c.bf16 %v966, %v965
        %v1034 = vpack.c.bf16 %v918, %v917
        %v1035 = vpack.c.bf16 %v1014, %v1013
        %v1036 = vpack.c.bf16 %v968, %v967
        %v1037 = vpack.c.bf16 %v920, %v919
        %v1038 = vpack.c.bf16 %v1016, %v1015
        %v1039 = vpack.c.bf16 %v970, %v969
        %v1040 = vpack.c.bf16 %v922, %v921
        %v1041 = vpack.c.bf16 %v1018, %v1017
        %v1042 = vpack.c.bf16 %v972, %v971
        %v1043 = vpack.c.bf16 %v924, %v923
        %v1044 = vpack.c.bf16 %v1020, %v1019
        %v1045 = vld [vmem:[#allocation3 + $0xc0] sm:$0xf]
        %v1046 = vld [vmem:[#allocation3 + $0xc4] sm:$0xf]
        %v1047 = vld [vmem:[#allocation3 + $0xc8] sm:$0xf]
        %v1048 = vld [vmem:[#allocation3 + $0xcc] sm:$0xf]
        %v1049 = vld [vmem:[#allocation3 + $0xd0] sm:$0xf]
        %v1050 = vld [vmem:[#allocation3 + $0xd4] sm:$0xf]
        %v1051 = vld [vmem:[#allocation3 + $0xd8] sm:$0xf]
        %v1052 = vld [vmem:[#allocation3 + $0xdc] sm:$0xf]
        %v1053 = vld [vmem:[#allocation3 + $0xe0] sm:$0xf]
        %v1054 = vld [vmem:[#allocation3 + $0xe4] sm:$0xf]
        %v1055 = vld [vmem:[#allocation3 + $0xe8] sm:$0xf]
        %v1056 = vld [vmem:[#allocation3 + $0xec] sm:$0xf]
        %v1057 = vld [vmem:[#allocation3 + $0xf0] sm:$0xf]
        %v1058 = vld [vmem:[#allocation3 + $0xf4] sm:$0xf]
        %v1059 = vld [vmem:[#allocation3 + $0xf8] sm:$0xf]
        %v1060 = vld [vmem:[#allocation3 + $0xfc] sm:$0xf]
        %v1061 = vld [vmem:[#allocation3 + $0x100] sm:$0xf]
        %v1062 = vld [vmem:[#allocation3 + $0x104] sm:$0xf]
        %v1063 = vld [vmem:[#allocation3 + $0x108] sm:$0xf]
        %v1064 = vld [vmem:[#allocation3 + $0x10c] sm:$0xf]
        %v1065 = vld [vmem:[#allocation3 + $0x110] sm:$0xf]
        %v1066 = vld [vmem:[#allocation3 + $0x114] sm:$0xf]
        %v1067 = vld [vmem:[#allocation3 + $0x118] sm:$0xf]
        %v1068 = vld [vmem:[#allocation3 + $0x11c] sm:$0xf]
        %v1069 = vld [vmem:[#allocation3 + $0x120] sm:$0xf]
        %v1070 = vld [vmem:[#allocation3 + $0x124] sm:$0xf]
        %v1071 = vld [vmem:[#allocation3 + $0x128] sm:$0xf]
        %v1072 = vld [vmem:[#allocation3 + $0x12c] sm:$0xf]
        %v1073 = vld [vmem:[#allocation3 + $0x130] sm:$0xf]
        %v1074 = vld [vmem:[#allocation3 + $0x134] sm:$0xf]
        %v1075 = vld [vmem:[#allocation3 + $0x138] sm:$0xf]
        %v1076 = vld [vmem:[#allocation3 + $0x13c] sm:$0xf]
        %v1077 = vld [vmem:[#allocation3 + $0x140] sm:$0xf]
        %v1078 = vld [vmem:[#allocation3 + $0x144] sm:$0xf]
        %v1079 = vld [vmem:[#allocation3 + $0x148] sm:$0xf]
        %v1080 = vld [vmem:[#allocation3 + $0x14c] sm:$0xf]
        %v1081 = vld [vmem:[#allocation3 + $0x150] sm:$0xf]
        %v1082 = vld [vmem:[#allocation3 + $0x154] sm:$0xf]
        %v1083 = vld [vmem:[#allocation3 + $0x158] sm:$0xf]
        %v1084 = vld [vmem:[#allocation3 + $0x15c] sm:$0xf]
        %v1085 = vld [vmem:[#allocation3 + $0x160] sm:$0xf]
        %v1086 = vld [vmem:[#allocation3 + $0x164] sm:$0xf]
        %v1087 = vld [vmem:[#allocation3 + $0x168] sm:$0xf]
        %v1088 = vld [vmem:[#allocation3 + $0x16c] sm:$0xf]
        %v1089 = vld [vmem:[#allocation3 + $0x170] sm:$0xf]
        %v1090 = vld [vmem:[#allocation3 + $0x174] sm:$0xf]
        %v1091 = vld [vmem:[#allocation3 + $0x178] sm:$0xf]
        %v1092 = vld [vmem:[#allocation3 + $0x17c] sm:$0xf]
        %v1141 = vunpack.c.l.b16 %v1045
        %v1142 = vunpack.c.l.b16 %v1046
        %v1143 = vunpack.c.l.b16 %v1047
        %v1144 = vunpack.c.l.b16 %v1048
        %v1145 = vunpack.c.l.b16 %v1049
        %v1146 = vunpack.c.l.b16 %v1050
        %v1147 = vunpack.c.l.b16 %v1051
        %v1148 = vunpack.c.l.b16 %v1052
        %v1149 = vunpack.c.l.b16 %v1053
        %v1150 = vunpack.c.l.b16 %v1054
        %v1151 = vunpack.c.l.b16 %v1055
        %v1152 = vunpack.c.l.b16 %v1056
        %v1153 = vunpack.c.l.b16 %v1057
        %v1154 = vunpack.c.l.b16 %v1058
        %v1155 = vunpack.c.l.b16 %v1059
        %v1156 = vunpack.c.l.b16 %v1060
        %v1157 = vunpack.c.l.b16 %v1061
        %v1158 = vunpack.c.l.b16 %v1062
        %v1159 = vunpack.c.l.b16 %v1063
        %v1160 = vunpack.c.l.b16 %v1064
        %v1161 = vunpack.c.l.b16 %v1065
        %v1162 = vunpack.c.l.b16 %v1066
        %v1163 = vunpack.c.l.b16 %v1067
        %v1164 = vunpack.c.l.b16 %v1068
        %v1165 = vunpack.c.l.b16 %v1069
        %v1166 = vunpack.c.l.b16 %v1070
        %v1167 = vunpack.c.l.b16 %v1071
        %v1168 = vunpack.c.l.b16 %v1072
        %v1169 = vunpack.c.l.b16 %v1073
        %v1170 = vunpack.c.l.b16 %v1074
        %v1171 = vunpack.c.l.b16 %v1075
        %v1172 = vunpack.c.l.b16 %v1076
        %v1173 = vunpack.c.l.b16 %v1077
        %v1174 = vunpack.c.l.b16 %v1078
        %v1175 = vunpack.c.l.b16 %v1079
        %v1176 = vunpack.c.l.b16 %v1080
        %v1177 = vunpack.c.l.b16 %v1081
        %v1178 = vunpack.c.l.b16 %v1082
        %v1179 = vunpack.c.l.b16 %v1083
        %v1180 = vunpack.c.l.b16 %v1084
        %v1181 = vunpack.c.l.b16 %v1085
        %v1182 = vunpack.c.l.b16 %v1086
        %v1183 = vunpack.c.l.b16 %v1087
        %v1184 = vunpack.c.l.b16 %v1088
        %v1185 = vunpack.c.l.b16 %v1089
        %v1186 = vunpack.c.l.b16 %v1090
        %v1187 = vunpack.c.l.b16 %v1091
        %v1188 = vunpack.c.l.b16 %v1092
        %v1189 = vpack.c.b16 %v1142, %v1141
        %v1190 = vpack.c.b16 %v1144, %v1143
        %v1191 = vpack.c.b16 %v1146, %v1145
        %v1192 = vpack.c.b16 %v1148, %v1147
        %v1193 = vpack.c.b16 %v1150, %v1149
        %v1194 = vpack.c.b16 %v1152, %v1151
        %v1195 = vpack.c.b16 %v1154, %v1153
        %v1196 = vpack.c.b16 %v1156, %v1155
        %v1197 = vpack.c.b16 %v1158, %v1157
        %v1198 = vpack.c.b16 %v1160, %v1159
        %v1199 = vpack.c.b16 %v1162, %v1161
        %v1200 = vpack.c.b16 %v1164, %v1163
        %v1201 = vpack.c.b16 %v1166, %v1165
        %v1202 = vpack.c.b16 %v1168, %v1167
        %v1203 = vpack.c.b16 %v1170, %v1169
        %v1204 = vpack.c.b16 %v1172, %v1171
        %v1205 = vpack.c.b16 %v1174, %v1173
        %v1206 = vpack.c.b16 %v1176, %v1175
        %v1207 = vpack.c.b16 %v1178, %v1177
        %v1208 = vpack.c.b16 %v1180, %v1179
        %v1209 = vpack.c.b16 %v1182, %v1181
        %v1210 = vpack.c.b16 %v1184, %v1183
        %v1211 = vpack.c.b16 %v1186, %v1185
        %v1212 = vpack.c.b16 %v1188, %v1187
        %1237 = vmatprep.subr.bf16.mxu0 0
        %1238 = vmatpush1.bf16.msra.mxu0 %v1189
        %1239 = vmatprep.subr.bf16.mxu0 0
        %1240 = vmatpush1.bf16.msra.mxu0 %v1190
        %1241 = vmatprep.subr.bf16.mxu0 0
        %1242 = vmatpush1.bf16.msra.mxu0 %v1191
        %1243 = vmatprep.subr.bf16.mxu0 0
        %1244 = vmatpush1.bf16.msra.mxu0 %v1192
        %1245 = vmatprep.subr.bf16.mxu0 0
        %1246 = vmatpush1.bf16.msra.mxu0 %v1193
        %1247 = vmatprep.subr.bf16.mxu0 0
        %1248 = vmatpush1.bf16.msra.mxu0 %v1194
        %1249 = vmatprep.subr.bf16.mxu0 0
        %1250 = vmatpush1.bf16.msra.mxu0 %v1195
        %1251 = vmatprep.subr.bf16.mxu0 0
        %1252 = vmatpush1.bf16.msra.mxu0 %v1196
        %1253 = vmatprep.subr.bf16.mxu0 0
        %1254 = vmatpush1.bf16.msra.mxu0 %v1197
        %1255 = vmatprep.subr.bf16.mxu0 0
        %1256 = vmatpush1.bf16.msra.mxu0 %v1198
        %1257 = vmatprep.subr.bf16.mxu0 0
        %1258 = vmatpush1.bf16.msra.mxu0 %v1199
        %1259 = vmatprep.subr.bf16.mxu0 0
        %1260 = vmatpush1.bf16.msra.mxu0 %v1200
        %1261 = vmatprep.subr.bf16.mxu0 0
        %1262 = vmatpush1.bf16.msra.mxu0 %v1201
        %1263 = vmatprep.subr.bf16.mxu0 0
        %1264 = vmatpush1.bf16.msra.mxu0 %v1202
        %1265 = vmatprep.subr.bf16.mxu0 0
        %1266 = vmatpush1.bf16.msra.mxu0 %v1203
        %1267 = vmatprep.subr.bf16.mxu0 0
        %1268 = vmatpush1.bf16.msra.mxu0 %v1204
        %1269 = vmatprep.mubr.bf16.mxu0 %v1022
        %1270 = vmatmul.mubr.bf16.gmra.mrb[0].mxu0 %v1021
        %v1271 = vpop.f32.mrb[0].mxu0
        %v1272 = vadd.f32 0.0, %v1271
        %v1273 = vpop.f32.mrb[0].mxu0
        %v1274 = vpop.f32.mrb[0].mxu0
        %v1275 = vadd.f32 0.0, %v1274
        %v1276 = vpop.f32.mrb[0].mxu0
        %1277 = vmatprep.mubr.bf16.mxu0 %v1025
        %1278 = vmatmul.mubr.bf16.gmra.mrb[0].mxu0 %v1024
        %v1279 = vpop.f32.mrb[0].mxu0
        %v1280 = vadd.f32 0.0, %v1279
        %v1281 = vpop.f32.mrb[0].mxu0
        %v1282 = vpop.f32.mrb[0].mxu0
        %v1283 = vadd.f32 0.0, %v1282
        %v1284 = vpop.f32.mrb[0].mxu0
        %1285 = vmatprep.mubr.bf16.mxu0 %v1028
        %1286 = vmatmul.mubr.bf16.gmra.mrb[0].mxu0 %v1027
        %v1287 = vpop.f32.mrb[0].mxu0
        %v1288 = vadd.f32 0.0, %v1287
        %v1289 = vpop.f32.mrb[0].mxu0
        %v1290 = vpop.f32.mrb[0].mxu0
        %v1291 = vadd.f32 0.0, %v1290
        %v1292 = vpop.f32.mrb[0].mxu0
        %1293 = vmatprep.mubr.bf16.mxu0 %v1031
        %1294 = vmatmul.mubr.bf16.gmra.mrb[0].mxu0 %v1030
        %v1295 = vpop.f32.mrb[0].mxu0
        %v1296 = vadd.f32 0.0, %v1295
        %v1297 = vpop.f32.mrb[0].mxu0
        %v1298 = vpop.f32.mrb[0].mxu0
        %v1299 = vadd.f32 0.0, %v1298
        %v1300 = vpop.f32.mrb[0].mxu0
        %1301 = vmatprep.mubr.bf16.mxu0 %v1034
        %1302 = vmatmul.mubr.bf16.gmra.mrb[0].mxu0 %v1033
        %v1303 = vpop.f32.mrb[0].mxu0
        %v1304 = vadd.f32 0.0, %v1303
        %v1305 = vpop.f32.mrb[0].mxu0
        %v1306 = vpop.f32.mrb[0].mxu0
        %v1307 = vadd.f32 0.0, %v1306
        %v1308 = vpop.f32.mrb[0].mxu0
        %1309 = vmatprep.mubr.bf16.mxu0 %v1037
        %1310 = vmatmul.mubr.bf16.gmra.mrb[0].mxu0 %v1036
        %v1311 = vpop.f32.mrb[0].mxu0
        %v1312 = vadd.f32 0.0, %v1311
        %v1313 = vpop.f32.mrb[0].mxu0
        %v1314 = vpop.f32.mrb[0].mxu0
        %v1315 = vadd.f32 0.0, %v1314
        %v1316 = vpop.f32.mrb[0].mxu0
        %1317 = vmatprep.mubr.bf16.mxu0 %v1040
        %1318 = vmatmul.mubr.bf16.gmra.mrb[0].mxu0 %v1039
        %v1319 = vpop.f32.mrb[0].mxu0
        %v1320 = vadd.f32 0.0, %v1319
        %v1321 = vpop.f32.mrb[0].mxu0
        %v1322 = vpop.f32.mrb[0].mxu0
        %v1323 = vadd.f32 0.0, %v1322
        %v1324 = vpop.f32.mrb[0].mxu0
        %1325 = vmatprep.mubr.bf16.mxu0 %v1043
        %1326 = vmatmul.mubr.bf16.gmra.mrb[0].mxu0 %v1042
        %v1327 = vpop.f32.mrb[0].mxu0
        %v1328 = vadd.f32 0.0, %v1327
        %v1329 = vpop.f32.mrb[0].mxu0
        %v1330 = vpop.f32.mrb[0].mxu0
        %v1331 = vadd.f32 0.0, %v1330
        %v1332 = vpop.f32.mrb[0].mxu0
        %1333 = vdwg.mxu0
        %1334 = vmatprep.subr.bf16.mxu0 0
        %1335 = vmatpush1.bf16.msra.mxu0 %v1205
        %1336 = vmatprep.subr.bf16.mxu0 0
        %1337 = vmatpush1.bf16.msra.mxu0 %v1206
        %1338 = vmatprep.subr.bf16.mxu0 0
        %1339 = vmatpush1.bf16.msra.mxu0 %v1207
        %1340 = vmatprep.subr.bf16.mxu0 0
        %1341 = vmatpush1.bf16.msra.mxu0 %v1208
        %1342 = vmatprep.subr.bf16.mxu0 0
        %1343 = vmatpush1.bf16.msra.mxu0 %v1209
        %1344 = vmatprep.subr.bf16.mxu0 0
        %1345 = vmatpush1.bf16.msra.mxu0 %v1210
        %1346 = vmatprep.subr.bf16.mxu0 0
        %1347 = vmatpush1.bf16.msra.mxu0 %v1211
        %1348 = vmatprep.subr.bf16.mxu0 0
        %1349 = vmatpush1.bf16.msra.mxu0 %v1212
        %1350 = vmatprep.subr.bf16.mxu0 0
        %1351 = vmatpush1.bf16.msra.mxu0 0
        %1352 = vmatprep.subr.bf16.mxu0 0
        %1353 = vmatpush1.bf16.msra.mxu0 0
        %1354 = vmatprep.subr.bf16.mxu0 0
        %1355 = vmatpush1.bf16.msra.mxu0 0
        %1356 = vmatprep.subr.bf16.mxu0 0
        %1357 = vmatpush1.bf16.msra.mxu0 0
        %1358 = vmatprep.subr.bf16.mxu0 0
        %1359 = vmatpush1.bf16.msra.mxu0 0
        %1360 = vmatprep.subr.bf16.mxu0 0
        %1361 = vmatpush1.bf16.msra.mxu0 0
        %1362 = vmatprep.subr.bf16.mxu0 0
        %1363 = vmatpush1.bf16.msra.mxu0 0
        %1364 = vmatprep.subr.bf16.mxu0 0
        %1365 = vmatpush1.bf16.msra.mxu0 0
        %1366 = vmatprep.mubr.bf16.mxu0 0
        %1367 = vmatmul.mubr.bf16.gmra.mrb[0].mxu0 %v1023
        %v1368 = vpop.f32.mrb[0].mxu0
        %v1369 = vadd.f32 %v1272, %v1368
        %v1370 = vpop.f32.mrb[0].mxu0
        %v1371 = vpop.f32.mrb[0].mxu0
        %v1372 = vadd.f32 %v1275, %v1371
        %v1373 = vpop.f32.mrb[0].mxu0
        %1374 = vmatprep.mubr.bf16.mxu0 0
        %1375 = vmatmul.mubr.bf16.gmra.mrb[0].mxu0 %v1026
        %v1376 = vpop.f32.mrb[0].mxu0
        %v1377 = vadd.f32 %v1280, %v1376
        %v1378 = vpop.f32.mrb[0].mxu0
        %v1379 = vpop.f32.mrb[0].mxu0
        %v1380 = vadd.f32 %v1283, %v1379
        %v1381 = vpop.f32.mrb[0].mxu0
        %1382 = vmatprep.mubr.bf16.mxu0 0
        %1383 = vmatmul.mubr.bf16.gmra.mrb[0].mxu0 %v1029
        %v1384 = vpop.f32.mrb[0].mxu0
        %v1385 = vadd.f32 %v1288, %v1384
        %v1386 = vpop.f32.mrb[0].mxu0
        %v1387 = vpop.f32.mrb[0].mxu0
        %v1388 = vadd.f32 %v1291, %v1387
        %v1389 = vpop.f32.mrb[0].mxu0
        %1390 = vmatprep.mubr.bf16.mxu0 0
        %1391 = vmatmul.mubr.bf16.gmra.mrb[0].mxu0 %v1032
        %v1392 = vpop.f32.mrb[0].mxu0
        %v1393 = vadd.f32 %v1296, %v1392
        %v1394 = vpop.f32.mrb[0].mxu0
        %v1395 = vpop.f32.mrb[0].mxu0
        %v1396 = vadd.f32 %v1299, %v1395
        %v1397 = vpop.f32.mrb[0].mxu0
        %1398 = vmatprep.mubr.bf16.mxu0 0
        %1399 = vmatmul.mubr.bf16.gmra.mrb[0].mxu0 %v1035
        %v1400 = vpop.f32.mrb[0].mxu0
        %v1401 = vadd.f32 %v1304, %v1400
        %v1402 = vpop.f32.mrb[0].mxu0
        %v1403 = vpop.f32.mrb[0].mxu0
        %v1404 = vadd.f32 %v1307, %v1403
        %v1405 = vpop.f32.mrb[0].mxu0
        %1406 = vmatprep.mubr.bf16.mxu0 0
        %1407 = vmatmul.mubr.bf16.gmra.mrb[0].mxu0 %v1038
        %v1408 = vpop.f32.mrb[0].mxu0
        %v1409 = vadd.f32 %v1312, %v1408
        %v1410 = vpop.f32.mrb[0].mxu0
        %v1411 = vpop.f32.mrb[0].mxu0
        %v1412 = vadd.f32 %v1315, %v1411
        %v1413 = vpop.f32.mrb[0].mxu0
        %1414 = vmatprep.mubr.bf16.mxu0 0
        %1415 = vmatmul.mubr.bf16.gmra.mrb[0].mxu0 %v1041
        %v1416 = vpop.f32.mrb[0].mxu0
        %v1417 = vadd.f32 %v1320, %v1416
        %v1418 = vpop.f32.mrb[0].mxu0
        %v1419 = vpop.f32.mrb[0].mxu0
        %v1420 = vadd.f32 %v1323, %v1419
        %v1421 = vpop.f32.mrb[0].mxu0
        %1422 = vmatprep.mubr.bf16.mxu0 0
        %1423 = vmatmul.mubr.bf16.gmra.mrb[0].mxu0 %v1044
        %v1424 = vpop.f32.mrb[0].mxu0
        %v1425 = vadd.f32 %v1328, %v1424
        %v1426 = vpop.f32.mrb[0].mxu0
        %v1427 = vpop.f32.mrb[0].mxu0
        %v1428 = vadd.f32 %v1331, %v1427
        %v1429 = vpop.f32.mrb[0].mxu0
        %1430 = vdwg.mxu0
        %v1479 = vunpack.c.l.b16 %v860
        %v1480 = vunpack.c.l.b16 %v861
        %v1481 = vunpack.c.l.b16 %v862
        %v1482 = vunpack.c.l.b16 %v863
        %v1483 = vunpack.c.l.b16 %v864
        %v1484 = vunpack.c.l.b16 %v865
        %v1485 = vunpack.c.l.b16 %v866
        %v1486 = vunpack.c.l.b16 %v867
        %v1487 = vunpack.c.l.b16 %v868
        %v1488 = vunpack.c.l.b16 %v869
        %v1489 = vunpack.c.l.b16 %v870
        %v1490 = vunpack.c.l.b16 %v871
        %v1491 = vunpack.c.l.b16 %v872
        %v1492 = vunpack.c.l.b16 %v873
        %v1493 = vunpack.c.l.b16 %v874
        %v1494 = vunpack.c.l.b16 %v875
        %v1495 = vunpack.c.l.b16 %v876
        %v1496 = vunpack.c.l.b16 %v877
        %v1497 = vunpack.c.l.b16 %v878
        %v1498 = vunpack.c.l.b16 %v879
        %v1499 = vunpack.c.l.b16 %v880
        %v1500 = vunpack.c.l.b16 %v881
        %v1501 = vunpack.c.l.b16 %v882
        %v1502 = vunpack.c.l.b16 %v883
        %v1503 = vunpack.c.l.b16 %v884
        %v1504 = vunpack.c.l.b16 %v885
        %v1505 = vunpack.c.l.b16 %v886
        %v1506 = vunpack.c.l.b16 %v887
        %v1507 = vunpack.c.l.b16 %v888
        %v1508 = vunpack.c.l.b16 %v889
        %v1509 = vunpack.c.l.b16 %v890
        %v1510 = vunpack.c.l.b16 %v891
        %v1511 = vunpack.c.l.b16 %v892
        %v1512 = vunpack.c.l.b16 %v893
        %v1513 = vunpack.c.l.b16 %v894
        %v1514 = vunpack.c.l.b16 %v895
        %v1515 = vunpack.c.l.b16 %v896
        %v1516 = vunpack.c.l.b16 %v897
        %v1517 = vunpack.c.l.b16 %v898
        %v1518 = vunpack.c.l.b16 %v899
        %v1519 = vunpack.c.l.b16 %v900
        %v1520 = vunpack.c.l.b16 %v901
        %v1521 = vunpack.c.l.b16 %v902
        %v1522 = vunpack.c.l.b16 %v903
        %v1523 = vunpack.c.l.b16 %v904
        %v1524 = vunpack.c.l.b16 %v905
        %v1525 = vunpack.c.l.b16 %v906
        %v1526 = vunpack.c.l.b16 %v907
        %v1527 = vpack.c.b16 %v1480, %v1479
        %v1528 = vpack.c.b16 %v1482, %v1481
        %v1529 = vpack.c.b16 %v1484, %v1483
        %v1530 = vpack.c.b16 %v1486, %v1485
        %v1531 = vpack.c.b16 %v1488, %v1487
        %v1532 = vpack.c.b16 %v1490, %v1489
        %v1533 = vpack.c.b16 %v1492, %v1491
        %v1534 = vpack.c.b16 %v1494, %v1493
        %v1535 = vpack.c.b16 %v1496, %v1495
        %v1536 = vpack.c.b16 %v1498, %v1497
        %v1537 = vpack.c.b16 %v1500, %v1499
        %v1538 = vpack.c.b16 %v1502, %v1501
        %v1539 = vpack.c.b16 %v1504, %v1503
        %v1540 = vpack.c.b16 %v1506, %v1505
        %v1541 = vpack.c.b16 %v1508, %v1507
        %v1542 = vpack.c.b16 %v1510, %v1509
        %v1543 = vpack.c.b16 %v1512, %v1511
        %v1544 = vpack.c.b16 %v1514, %v1513
        %v1545 = vpack.c.b16 %v1516, %v1515
        %v1546 = vpack.c.b16 %v1518, %v1517
        %v1547 = vpack.c.b16 %v1520, %v1519
        %v1548 = vpack.c.b16 %v1522, %v1521
        %v1549 = vpack.c.b16 %v1524, %v1523
        %v1550 = vpack.c.b16 %v1526, %v1525
        %1575 = vmatprep.subr.bf16.mxu0 0
        %1576 = vmatpush1.bf16.msra.mxu0 %v1527
        %1577 = vmatprep.subr.bf16.mxu0 0
        %1578 = vmatpush1.bf16.msra.mxu0 %v1528
        %1579 = vmatprep.subr.bf16.mxu0 0
        %1580 = vmatpush1.bf16.msra.mxu0 %v1529
        %1581 = vmatprep.subr.bf16.mxu0 0
        %1582 = vmatpush1.bf16.msra.mxu0 %v1530
        %1583 = vmatprep.subr.bf16.mxu0 0
        %1584 = vmatpush1.bf16.msra.mxu0 %v1531
        %1585 = vmatprep.subr.bf16.mxu0 0
        %1586 = vmatpush1.bf16.msra.mxu0 %v1532
        %1587 = vmatprep.subr.bf16.mxu0 0
        %1588 = vmatpush1.bf16.msra.mxu0 %v1533
        %1589 = vmatprep.subr.bf16.mxu0 0
        %1590 = vmatpush1.bf16.msra.mxu0 %v1534
        %1591 = vmatprep.subr.bf16.mxu0 0
        %1592 = vmatpush1.bf16.msra.mxu0 %v1535
        %1593 = vmatprep.subr.bf16.mxu0 0
        %1594 = vmatpush1.bf16.msra.mxu0 %v1536
        %1595 = vmatprep.subr.bf16.mxu0 0
        %1596 = vmatpush1.bf16.msra.mxu0 %v1537
        %1597 = vmatprep.subr.bf16.mxu0 0
        %1598 = vmatpush1.bf16.msra.mxu0 %v1538
        %1599 = vmatprep.subr.bf16.mxu0 0
        %1600 = vmatpush1.bf16.msra.mxu0 %v1539
        %1601 = vmatprep.subr.bf16.mxu0 0
        %1602 = vmatpush1.bf16.msra.mxu0 %v1540
        %1603 = vmatprep.subr.bf16.mxu0 0
        %1604 = vmatpush1.bf16.msra.mxu0 %v1541
        %1605 = vmatprep.subr.bf16.mxu0 0
        %1606 = vmatpush1.bf16.msra.mxu0 %v1542
        %1607 = vmatprep.mubr.bf16.mxu0 %v837
        %1608 = vmatmul.mubr.bf16.gmra.mrb[0].mxu0 %v836
        %v1609 = vpop.f32.mrb[0].mxu0
        %v1610 = vadd.f32 %v1369, %v1609
        %v1611 = vpop.f32.mrb[0].mxu0
        %v1612 = vpop.f32.mrb[0].mxu0
        %v1613 = vadd.f32 %v1372, %v1612
        %v1614 = vpop.f32.mrb[0].mxu0
        %1615 = vmatprep.mubr.bf16.mxu0 %v840
        %1616 = vmatmul.mubr.bf16.gmra.mrb[0].mxu0 %v839
        %v1617 = vpop.f32.mrb[0].mxu0
        %v1618 = vadd.f32 %v1377, %v1617
        %v1619 = vpop.f32.mrb[0].mxu0
        %v1620 = vpop.f32.mrb[0].mxu0
        %v1621 = vadd.f32 %v1380, %v1620
        %v1622 = vpop.f32.mrb[0].mxu0
        %1623 = vmatprep.mubr.bf16.mxu0 %v843
        %1624 = vmatmul.mubr.bf16.gmra.mrb[0].mxu0 %v842
        %v1625 = vpop.f32.mrb[0].mxu0
        %v1626 = vadd.f32 %v1385, %v1625
        %v1627 = vpop.f32.mrb[0].mxu0
        %v1628 = vpop.f32.mrb[0].mxu0
        %v1629 = vadd.f32 %v1388, %v1628
        %v1630 = vpop.f32.mrb[0].mxu0
        %1631 = vmatprep.mubr.bf16.mxu0 %v846
        %1632 = vmatmul.mubr.bf16.gmra.mrb[0].mxu0 %v845
        %v1633 = vpop.f32.mrb[0].mxu0
        %v1634 = vadd.f32 %v1393, %v1633
        %v1635 = vpop.f32.mrb[0].mxu0
        %v1636 = vpop.f32.mrb[0].mxu0
        %v1637 = vadd.f32 %v1396, %v1636
        %v1638 = vpop.f32.mrb[0].mxu0
        %1639 = vmatprep.mubr.bf16.mxu0 %v849
        %1640 = vmatmul.mubr.bf16.gmra.mrb[0].mxu0 %v848
        %v1641 = vpop.f32.mrb[0].mxu0
        %v1642 = vadd.f32 %v1401, %v1641
        %v1643 = vpop.f32.mrb[0].mxu0
        %v1644 = vpop.f32.mrb[0].mxu0
        %v1645 = vadd.f32 %v1404, %v1644
        %v1646 = vpop.f32.mrb[0].mxu0
        %1647 = vmatprep.mubr.bf16.mxu0 %v852
        %1648 = vmatmul.mubr.bf16.gmra.mrb[0].mxu0 %v851
        %v1649 = vpop.f32.mrb[0].mxu0
        %v1650 = vadd.f32 %v1409, %v1649
        %v1651 = vpop.f32.mrb[0].mxu0
        %v1652 = vpop.f32.mrb[0].mxu0
        %v1653 = vadd.f32 %v1412, %v1652
        %v1654 = vpop.f32.mrb[0].mxu0
        %1655 = vmatprep.mubr.bf16.mxu0 %v855
        %1656 = vmatmul.mubr.bf16.gmra.mrb[0].mxu0 %v854
        %v1657 = vpop.f32.mrb[0].mxu0
        %v1658 = vadd.f32 %v1417, %v1657
        %v1659 = vpop.f32.mrb[0].mxu0
        %v1660 = vpop.f32.mrb[0].mxu0
        %v1661 = vadd.f32 %v1420, %v1660
        %v1662 = vpop.f32.mrb[0].mxu0
        %1663 = vmatprep.mubr.bf16.mxu0 %v858
        %1664 = vmatmul.mubr.bf16.gmra.mrb[0].mxu0 %v857
        %v1665 = vpop.f32.mrb[0].mxu0
        %v1666 = vadd.f32 %v1425, %v1665
        %v1667 = vpop.f32.mrb[0].mxu0
        %v1668 = vpop.f32.mrb[0].mxu0
        %v1669 = vadd.f32 %v1428, %v1668
        %v1670 = vpop.f32.mrb[0].mxu0
        %1671 = vdwg.mxu0
        %1672 = vmatprep.subr.bf16.mxu0 0
        %1673 = vmatpush1.bf16.msra.mxu0 %v1543
        %1674 = vmatprep.subr.bf16.mxu0 0
        %1675 = vmatpush1.bf16.msra.mxu0 %v1544
        %1676 = vmatprep.subr.bf16.mxu0 0
        %1677 = vmatpush1.bf16.msra.mxu0 %v1545
        %1678 = vmatprep.subr.bf16.mxu0 0
        %1679 = vmatpush1.bf16.msra.mxu0 %v1546
        %1680 = vmatprep.subr.bf16.mxu0 0
        %1681 = vmatpush1.bf16.msra.mxu0 %v1547
        %1682 = vmatprep.subr.bf16.mxu0 0
        %1683 = vmatpush1.bf16.msra.mxu0 %v1548
        %1684 = vmatprep.subr.bf16.mxu0 0
        %1685 = vmatpush1.bf16.msra.mxu0 %v1549
        %1686 = vmatprep.subr.bf16.mxu0 0
        %1687 = vmatpush1.bf16.msra.mxu0 %v1550
        %1688 = vmatprep.subr.bf16.mxu0 0
        %1689 = vmatpush1.bf16.msra.mxu0 0
        %1690 = vmatprep.subr.bf16.mxu0 0
        %1691 = vmatpush1.bf16.msra.mxu0 0
        %1692 = vmatprep.subr.bf16.mxu0 0
        %1693 = vmatpush1.bf16.msra.mxu0 0
        %1694 = vmatprep.subr.bf16.mxu0 0
        %1695 = vmatpush1.bf16.msra.mxu0 0
        %1696 = vmatprep.subr.bf16.mxu0 0
        %1697 = vmatpush1.bf16.msra.mxu0 0
        %1698 = vmatprep.subr.bf16.mxu0 0
        %1699 = vmatpush1.bf16.msra.mxu0 0
        %1700 = vmatprep.subr.bf16.mxu0 0
        %1701 = vmatpush1.bf16.msra.mxu0 0
        %1702 = vmatprep.subr.bf16.mxu0 0
        %1703 = vmatpush1.bf16.msra.mxu0 0
        %1704 = vmatprep.mubr.bf16.mxu0 0
        %1705 = vmatmul.mubr.bf16.gmra.mrb[0].mxu0 %v838
        %v1706 = vpop.f32.mrb[0].mxu0
        %v1707 = vadd.f32 %v1610, %v1706
        %v1708 = vpop.f32.mrb[0].mxu0
        %v1709 = vpop.f32.mrb[0].mxu0
        %v1710 = vadd.f32 %v1613, %v1709
        %v1711 = vpop.f32.mrb[0].mxu0
        %1712 = vmatprep.mubr.bf16.mxu0 0
        %1713 = vmatmul.mubr.bf16.gmra.mrb[0].mxu0 %v841
        %v1714 = vpop.f32.mrb[0].mxu0
        %v1715 = vadd.f32 %v1618, %v1714
        %v1716 = vpop.f32.mrb[0].mxu0
        %v1717 = vpop.f32.mrb[0].mxu0
        %v1718 = vadd.f32 %v1621, %v1717
        %v1719 = vpop.f32.mrb[0].mxu0
        %1720 = vmatprep.mubr.bf16.mxu0 0
        %1721 = vmatmul.mubr.bf16.gmra.mrb[0].mxu0 %v844
        %v1722 = vpop.f32.mrb[0].mxu0
        %v1723 = vadd.f32 %v1626, %v1722
        %v1724 = vpop.f32.mrb[0].mxu0
        %v1725 = vpop.f32.mrb[0].mxu0
        %v1726 = vadd.f32 %v1629, %v1725
        %v1727 = vpop.f32.mrb[0].mxu0
        %1728 = vmatprep.mubr.bf16.mxu0 0
        %1729 = vmatmul.mubr.bf16.gmra.mrb[0].mxu0 %v847
        %v1730 = vpop.f32.mrb[0].mxu0
        %v1731 = vadd.f32 %v1634, %v1730
        %v1732 = vpop.f32.mrb[0].mxu0
        %v1733 = vpop.f32.mrb[0].mxu0
        %v1734 = vadd.f32 %v1637, %v1733
        %v1735 = vpop.f32.mrb[0].mxu0
        %1736 = vmatprep.mubr.bf16.mxu0 0
        %1737 = vmatmul.mubr.bf16.gmra.mrb[0].mxu0 %v850
        %v1738 = vpop.f32.mrb[0].mxu0
        %v1739 = vadd.f32 %v1642, %v1738
        %v1740 = vpop.f32.mrb[0].mxu0
        %v1741 = vpop.f32.mrb[0].mxu0
        %v1742 = vadd.f32 %v1645, %v1741
        %v1743 = vpop.f32.mrb[0].mxu0
        %1744 = vmatprep.mubr.bf16.mxu0 0
        %1745 = vmatmul.mubr.bf16.gmra.mrb[0].mxu0 %v853
        %v1746 = vpop.f32.mrb[0].mxu0
        %v1747 = vadd.f32 %v1650, %v1746
        %v1748 = vpop.f32.mrb[0].mxu0
        %v1749 = vpop.f32.mrb[0].mxu0
        %v1750 = vadd.f32 %v1653, %v1749
        %v1751 = vpop.f32.mrb[0].mxu0
        %1752 = vmatprep.mubr.bf16.mxu0 0
        %1753 = vmatmul.mubr.bf16.gmra.mrb[0].mxu0 %v856
        %v1754 = vpop.f32.mrb[0].mxu0
        %v1755 = vadd.f32 %v1658, %v1754
        %v1756 = vpop.f32.mrb[0].mxu0
        %v1757 = vpop.f32.mrb[0].mxu0
        %v1758 = vadd.f32 %v1661, %v1757
        %v1759 = vpop.f32.mrb[0].mxu0
        %1760 = vmatprep.mubr.bf16.mxu0 0
        %1761 = vmatmul.mubr.bf16.gmra.mrb[0].mxu0 %v859
        %v1762 = vpop.f32.mrb[0].mxu0
        %v1763 = vadd.f32 %v1666, %v1762
        %v1764 = vpop.f32.mrb[0].mxu0
        %v1765 = vpop.f32.mrb[0].mxu0
        %v1766 = vadd.f32 %v1669, %v1765
        %v1767 = vpop.f32.mrb[0].mxu0
        %1768 = vdwg.mxu0
        %s1769 = scalar_lea.vmem [#allocation2], 32
        %v1770 = vld [vmem:[%s1769] sm:$0xff]
        %v1771 = vld [vmem:[%s1769 + $0x8] sm:$0xff]
        %v1772 = vld [vmem:[%s1769 + $0x10] sm:$0xff]
        %v1773 = vld [vmem:[%s1769 + $0x18] sm:$0xff]
        %v1774 = vld [vmem:[%s1769 + $0x20] sm:$0xff]
        %v1775 = vld [vmem:[%s1769 + $0x28] sm:$0xff]
        %v1776 = vld [vmem:[%s1769 + $0x30] sm:$0xff]
        %v1777 = vld [vmem:[%s1769 + $0x38] sm:$0xff]
        %v1778 = vld [vmem:[%s1769 + $0x40] sm:$0xff]
        %v1779 = vld [vmem:[%s1769 + $0x48] sm:$0xff]
        %v1780 = vld [vmem:[%s1769 + $0x50] sm:$0xff]
        %v1781 = vld [vmem:[%s1769 + $0x58] sm:$0xff]
        %v1782 = vld [vmem:[%s1769 + $0x60] sm:$0xff]
        %v1783 = vld [vmem:[%s1769 + $0x68] sm:$0xff]
        %v1784 = vld [vmem:[%s1769 + $0x70] sm:$0xff]
        %v1785 = vld [vmem:[%s1769 + $0x78] sm:$0xff]
        %v1786 = vrot.slane %v1770, 7
        %v1787 = vrot.slane %v1772, 7
        %v1788 = vrot.slane %v1774, 7
        %v1789 = vrot.slane %v1776, 7
        %v1790 = vrot.slane %v1778, 7
        %v1791 = vrot.slane %v1780, 7
        %v1792 = vrot.slane %v1782, 7
        %v1793 = vrot.slane %v1784, 7
        %v1794 = vrot.slane %v1771, 7
        %v1795 = vrot.slane %v1773, 7
        %v1796 = vrot.slane %v1775, 7
        %v1797 = vrot.slane %v1777, 7
        %v1798 = vrot.slane %v1779, 7
        %v1799 = vrot.slane %v1781, 7
        %v1800 = vrot.slane %v1783, 7
        %v1801 = vrot.slane %v1785, 7
        %v1802 = vsel %vm719, %v1786, %v1794
        %v1803 = vsel %vm719, %v1787, %v1795
        %v1804 = vsel %vm719, %v1788, %v1796
        %v1805 = vsel %vm719, %v1789, %v1797
        %v1806 = vsel %vm719, %v1790, %v1798
        %v1807 = vsel %vm719, %v1791, %v1799
        %v1808 = vsel %vm719, %v1792, %v1800
        %v1809 = vsel %vm719, %v1793, %v1801
        %v1810 = vsel %vm719, %v1794, %v1786
        %v1811 = vsel %vm719, %v1795, %v1787
        %v1812 = vsel %vm719, %v1796, %v1788
        %v1813 = vsel %vm719, %v1797, %v1789
        %v1814 = vsel %vm719, %v1798, %v1790
        %v1815 = vsel %vm719, %v1799, %v1791
        %v1816 = vsel %vm719, %v1800, %v1792
        %v1817 = vsel %vm719, %v1801, %v1793
        %v1818 = vsel %vm719, 0.0, %v1810
        %v1819 = vsel %vm720, 0.0, %v1802
        %v1820 = vsel %vm719, 0.0, %v1811
        %v1821 = vsel %vm720, 0.0, %v1803
        %v1822 = vsel %vm719, 0.0, %v1812
        %v1823 = vsel %vm720, 0.0, %v1804
        %v1824 = vsel %vm719, 0.0, %v1813
        %v1825 = vsel %vm720, 0.0, %v1805
        %v1826 = vsel %vm719, 0.0, %v1814
        %v1827 = vsel %vm720, 0.0, %v1806
        %v1828 = vsel %vm719, 0.0, %v1815
        %v1829 = vsel %vm720, 0.0, %v1807
        %v1830 = vsel %vm719, 0.0, %v1816
        %v1831 = vsel %vm720, 0.0, %v1808
        %v1832 = vsel %vm719, 0.0, %v1817
        %v1833 = vsel %vm720, 0.0, %v1809
        %v1834 = vrot.slane %v1770, 1
        %v1835 = vrot.slane %v1772, 1
        %v1836 = vrot.slane %v1774, 1
        %v1837 = vrot.slane %v1776, 1
        %v1838 = vrot.slane %v1778, 1
        %v1839 = vrot.slane %v1780, 1
        %v1840 = vrot.slane %v1782, 1
        %v1841 = vrot.slane %v1784, 1
        %v1842 = vrot.slane %v1771, 1
        %v1843 = vrot.slane %v1773, 1
        %v1844 = vrot.slane %v1775, 1
        %v1845 = vrot.slane %v1777, 1
        %v1846 = vrot.slane %v1779, 1
        %v1847 = vrot.slane %v1781, 1
        %v1848 = vrot.slane %v1783, 1
        %v1849 = vrot.slane %v1785, 1
        %v1850 = vsel %vm803, %v1834, %v1842
        %v1851 = vsel %vm803, %v1835, %v1843
        %v1852 = vsel %vm803, %v1836, %v1844
        %v1853 = vsel %vm803, %v1837, %v1845
        %v1854 = vsel %vm803, %v1838, %v1846
        %v1855 = vsel %vm803, %v1839, %v1847
        %v1856 = vsel %vm803, %v1840, %v1848
        %v1857 = vsel %vm803, %v1841, %v1849
        %v1858 = vsel %vm803, %v1842, %v1834
        %v1859 = vsel %vm803, %v1843, %v1835
        %v1860 = vsel %vm803, %v1844, %v1836
        %v1861 = vsel %vm803, %v1845, %v1837
        %v1862 = vsel %vm803, %v1846, %v1838
        %v1863 = vsel %vm803, %v1847, %v1839
        %v1864 = vsel %vm803, %v1848, %v1840
        %v1865 = vsel %vm803, %v1849, %v1841
        %v1866 = vsel %vm721, 0.0, %v1850
        %v1867 = vsel %vm722, 0.0, %v1858
        %v1868 = vsel %vm721, 0.0, %v1851
        %v1869 = vsel %vm722, 0.0, %v1859
        %v1870 = vsel %vm721, 0.0, %v1852
        %v1871 = vsel %vm722, 0.0, %v1860
        %v1872 = vsel %vm721, 0.0, %v1853
        %v1873 = vsel %vm722, 0.0, %v1861
        %v1874 = vsel %vm721, 0.0, %v1854
        %v1875 = vsel %vm722, 0.0, %v1862
        %v1876 = vsel %vm721, 0.0, %v1855
        %v1877 = vsel %vm722, 0.0, %v1863
        %v1878 = vsel %vm721, 0.0, %v1856
        %v1879 = vsel %vm722, 0.0, %v1864
        %v1880 = vsel %vm721, 0.0, %v1857
        %v1881 = vsel %vm722, 0.0, %v1865
        %v1882 = vpack.c.bf16 %v1819, %v1818
        %v1883 = vpack.c.bf16 %v1771, %v1770
        %v1884 = vpack.c.bf16 %v1867, %v1866
        %v1885 = vpack.c.bf16 %v1821, %v1820
        %v1886 = vpack.c.bf16 %v1773, %v1772
        %v1887 = vpack.c.bf16 %v1869, %v1868
        %v1888 = vpack.c.bf16 %v1823, %v1822
        %v1889 = vpack.c.bf16 %v1775, %v1774
        %v1890 = vpack.c.bf16 %v1871, %v1870
        %v1891 = vpack.c.bf16 %v1825, %v1824
        %v1892 = vpack.c.bf16 %v1777, %v1776
        %v1893 = vpack.c.bf16 %v1873, %v1872
        %v1894 = vpack.c.bf16 %v1827, %v1826
        %v1895 = vpack.c.bf16 %v1779, %v1778
        %v1896 = vpack.c.bf16 %v1875, %v1874
        %v1897 = vpack.c.bf16 %v1829, %v1828
        %v1898 = vpack.c.bf16 %v1781, %v1780
        %v1899 = vpack.c.bf16 %v1877, %v1876
        %v1900 = vpack.c.bf16 %v1831, %v1830
        %v1901 = vpack.c.bf16 %v1783, %v1782
        %v1902 = vpack.c.bf16 %v1879, %v1878
        %v1903 = vpack.c.bf16 %v1833, %v1832
        %v1904 = vpack.c.bf16 %v1785, %v1784
        %v1905 = vpack.c.bf16 %v1881, %v1880
        %v1906 = vld [vmem:[#allocation3 + $0x180] sm:$0xf]
        %v1907 = vld [vmem:[#allocation3 + $0x184] sm:$0xf]
        %v1908 = vld [vmem:[#allocation3 + $0x188] sm:$0xf]
        %v1909 = vld [vmem:[#allocation3 + $0x18c] sm:$0xf]
        %v1910 = vld [vmem:[#allocation3 + $0x190] sm:$0xf]
        %v1911 = vld [vmem:[#allocation3 + $0x194] sm:$0xf]
        %v1912 = vld [vmem:[#allocation3 + $0x198] sm:$0xf]
        %v1913 = vld [vmem:[#allocation3 + $0x19c] sm:$0xf]
        %v1914 = vld [vmem:[#allocation3 + $0x1a0] sm:$0xf]
        %v1915 = vld [vmem:[#allocation3 + $0x1a4] sm:$0xf]
        %v1916 = vld [vmem:[#allocation3 + $0x1a8] sm:$0xf]
        %v1917 = vld [vmem:[#allocation3 + $0x1ac] sm:$0xf]
        %v1918 = vld [vmem:[#allocation3 + $0x1b0] sm:$0xf]
        %v1919 = vld [vmem:[#allocation3 + $0x1b4] sm:$0xf]
        %v1920 = vld [vmem:[#allocation3 + $0x1b8] sm:$0xf]
        %v1921 = vld [vmem:[#allocation3 + $0x1bc] sm:$0xf]
        %v1922 = vld [vmem:[#allocation3 + $0x1c0] sm:$0xf]
        %v1923 = vld [vmem:[#allocation3 + $0x1c4] sm:$0xf]
        %v1924 = vld [vmem:[#allocation3 + $0x1c8] sm:$0xf]
        %v1925 = vld [vmem:[#allocation3 + $0x1cc] sm:$0xf]
        %v1926 = vld [vmem:[#allocation3 + $0x1d0] sm:$0xf]
        %v1927 = vld [vmem:[#allocation3 + $0x1d4] sm:$0xf]
        %v1928 = vld [vmem:[#allocation3 + $0x1d8] sm:$0xf]
        %v1929 = vld [vmem:[#allocation3 + $0x1dc] sm:$0xf]
        %v1930 = vld [vmem:[#allocation3 + $0x1e0] sm:$0xf]
        %v1931 = vld [vmem:[#allocation3 + $0x1e4] sm:$0xf]
        %v1932 = vld [vmem:[#allocation3 + $0x1e8] sm:$0xf]
        %v1933 = vld [vmem:[#allocation3 + $0x1ec] sm:$0xf]
        %v1934 = vld [vmem:[#allocation3 + $0x1f0] sm:$0xf]
        %v1935 = vld [vmem:[#allocation3 + $0x1f4] sm:$0xf]
        %v1936 = vld [vmem:[#allocation3 + $0x1f8] sm:$0xf]
        %v1937 = vld [vmem:[#allocation3 + $0x1fc] sm:$0xf]
        %v1938 = vld [vmem:[#allocation3 + $0x200] sm:$0xf]
        %v1939 = vld [vmem:[#allocation3 + $0x204] sm:$0xf]
        %v1940 = vld [vmem:[#allocation3 + $0x208] sm:$0xf]
        %v1941 = vld [vmem:[#allocation3 + $0x20c] sm:$0xf]
        %v1942 = vld [vmem:[#allocation3 + $0x210] sm:$0xf]
        %v1943 = vld [vmem:[#allocation3 + $0x214] sm:$0xf]
        %v1944 = vld [vmem:[#allocation3 + $0x218] sm:$0xf]
        %v1945 = vld [vmem:[#allocation3 + $0x21c] sm:$0xf]
        %v1946 = vld [vmem:[#allocation3 + $0x220] sm:$0xf]
        %v1947 = vld [vmem:[#allocation3 + $0x224] sm:$0xf]
        %v1948 = vld [vmem:[#allocation3 + $0x228] sm:$0xf]
        %v1949 = vld [vmem:[#allocation3 + $0x22c] sm:$0xf]
        %v1950 = vld [vmem:[#allocation3 + $0x230] sm:$0xf]
        %v1951 = vld [vmem:[#allocation3 + $0x234] sm:$0xf]
        %v1952 = vld [vmem:[#allocation3 + $0x238] sm:$0xf]
        %v1953 = vld [vmem:[#allocation3 + $0x23c] sm:$0xf]
        %v2002 = vunpack.c.l.b16 %v1906
        %v2003 = vunpack.c.l.b16 %v1907
        %v2004 = vunpack.c.l.b16 %v1908
        %v2005 = vunpack.c.l.b16 %v1909
        %v2006 = vunpack.c.l.b16 %v1910
        %v2007 = vunpack.c.l.b16 %v1911
        %v2008 = vunpack.c.l.b16 %v1912
        %v2009 = vunpack.c.l.b16 %v1913
        %v2010 = vunpack.c.l.b16 %v1914
        %v2011 = vunpack.c.l.b16 %v1915
        %v2012 = vunpack.c.l.b16 %v1916
        %v2013 = vunpack.c.l.b16 %v1917
        %v2014 = vunpack.c.l.b16 %v1918
        %v2015 = vunpack.c.l.b16 %v1919
        %v2016 = vunpack.c.l.b16 %v1920
        %v2017 = vunpack.c.l.b16 %v1921
        %v2018 = vunpack.c.l.b16 %v1922
        %v2019 = vunpack.c.l.b16 %v1923
        %v2020 = vunpack.c.l.b16 %v1924
        %v2021 = vunpack.c.l.b16 %v1925
        %v2022 = vunpack.c.l.b16 %v1926
        %v2023 = vunpack.c.l.b16 %v1927
        %v2024 = vunpack.c.l.b16 %v1928
        %v2025 = vunpack.c.l.b16 %v1929
        %v2026 = vunpack.c.l.b16 %v1930
        %v2027 = vunpack.c.l.b16 %v1931
        %v2028 = vunpack.c.l.b16 %v1932
        %v2029 = vunpack.c.l.b16 %v1933
        %v2030 = vunpack.c.l.b16 %v1934
        %v2031 = vunpack.c.l.b16 %v1935
        %v2032 = vunpack.c.l.b16 %v1936
        %v2033 = vunpack.c.l.b16 %v1937
        %v2034 = vunpack.c.l.b16 %v1938
        %v2035 = vunpack.c.l.b16 %v1939
        %v2036 = vunpack.c.l.b16 %v1940
        %v2037 = vunpack.c.l.b16 %v1941
        %v2038 = vunpack.c.l.b16 %v1942
        %v2039 = vunpack.c.l.b16 %v1943
        %v2040 = vunpack.c.l.b16 %v1944
        %v2041 = vunpack.c.l.b16 %v1945
        %v2042 = vunpack.c.l.b16 %v1946
        %v2043 = vunpack.c.l.b16 %v1947
        %v2044 = vunpack.c.l.b16 %v1948
        %v2045 = vunpack.c.l.b16 %v1949
        %v2046 = vunpack.c.l.b16 %v1950
        %v2047 = vunpack.c.l.b16 %v1951
        %v2048 = vunpack.c.l.b16 %v1952
        %v2049 = vunpack.c.l.b16 %v1953
        %v2050 = vpack.c.b16 %v2003, %v2002
        %v2051 = vpack.c.b16 %v2005, %v2004
        %v2052 = vpack.c.b16 %v2007, %v2006
        %v2053 = vpack.c.b16 %v2009, %v2008
        %v2054 = vpack.c.b16 %v2011, %v2010
        %v2055 = vpack.c.b16 %v2013, %v2012
        %v2056 = vpack.c.b16 %v2015, %v2014
        %v2057 = vpack.c.b16 %v2017, %v2016
        %v2058 = vpack.c.b16 %v2019, %v2018
        %v2059 = vpack.c.b16 %v2021, %v2020
        %v2060 = vpack.c.b16 %v2023, %v2022
        %v2061 = vpack.c.b16 %v2025, %v2024
        %v2062 = vpack.c.b16 %v2027, %v2026
        %v2063 = vpack.c.b16 %v2029, %v2028
        %v2064 = vpack.c.b16 %v2031, %v2030
        %v2065 = vpack.c.b16 %v2033, %v2032
        %v2066 = vpack.c.b16 %v2035, %v2034
        %v2067 = vpack.c.b16 %v2037, %v2036
        %v2068 = vpack.c.b16 %v2039, %v2038
        %v2069 = vpack.c.b16 %v2041, %v2040
        %v2070 = vpack.c.b16 %v2043, %v2042
        %v2071 = vpack.c.b16 %v2045, %v2044
        %v2072 = vpack.c.b16 %v2047, %v2046
        %v2073 = vpack.c.b16 %v2049, %v2048
        %2098 = vmatprep.subr.bf16.mxu0 0
        %2099 = vmatpush1.bf16.msra.mxu0 %v2050
        %2100 = vmatprep.subr.bf16.mxu0 0
        %2101 = vmatpush1.bf16.msra.mxu0 %v2051
        %2102 = vmatprep.subr.bf16.mxu0 0
        %2103 = vmatpush1.bf16.msra.mxu0 %v2052
        %2104 = vmatprep.subr.bf16.mxu0 0
        %2105 = vmatpush1.bf16.msra.mxu0 %v2053
        %2106 = vmatprep.subr.bf16.mxu0 0
        %2107 = vmatpush1.bf16.msra.mxu0 %v2054
        %2108 = vmatprep.subr.bf16.mxu0 0
        %2109 = vmatpush1.bf16.msra.mxu0 %v2055
        %2110 = vmatprep.subr.bf16.mxu0 0
        %2111 = vmatpush1.bf16.msra.mxu0 %v2056
        %2112 = vmatprep.subr.bf16.mxu0 0
        %2113 = vmatpush1.bf16.msra.mxu0 %v2057
        %2114 = vmatprep.subr.bf16.mxu0 0
        %2115 = vmatpush1.bf16.msra.mxu0 %v2058
        %2116 = vmatprep.subr.bf16.mxu0 0
        %2117 = vmatpush1.bf16.msra.mxu0 %v2059
        %2118 = vmatprep.subr.bf16.mxu0 0
        %2119 = vmatpush1.bf16.msra.mxu0 %v2060
        %2120 = vmatprep.subr.bf16.mxu0 0
        %2121 = vmatpush1.bf16.msra.mxu0 %v2061
        %2122 = vmatprep.subr.bf16.mxu0 0
        %2123 = vmatpush1.bf16.msra.mxu0 %v2062
        %2124 = vmatprep.subr.bf16.mxu0 0
        %2125 = vmatpush1.bf16.msra.mxu0 %v2063
        %2126 = vmatprep.subr.bf16.mxu0 0
        %2127 = vmatpush1.bf16.msra.mxu0 %v2064
        %2128 = vmatprep.subr.bf16.mxu0 0
        %2129 = vmatpush1.bf16.msra.mxu0 %v2065
        %2130 = vmatprep.mubr.bf16.mxu0 %v1883
        %2131 = vmatmul.mubr.bf16.gmra.mrb[0].mxu0 %v1882
        %v2132 = vpop.f32.mrb[0].mxu0
        %v2133 = vadd.f32 0.0, %v2132
        %v2134 = vpop.f32.mrb[0].mxu0
        %v2135 = vpop.f32.mrb[0].mxu0
        %v2136 = vadd.f32 0.0, %v2135
        %v2137 = vpop.f32.mrb[0].mxu0
        %2138 = vmatprep.mubr.bf16.mxu0 %v1886
        %2139 = vmatmul.mubr.bf16.gmra.mrb[0].mxu0 %v1885
        %v2140 = vpop.f32.mrb[0].mxu0
        %v2141 = vadd.f32 0.0, %v2140
        %v2142 = vpop.f32.mrb[0].mxu0
        %v2143 = vpop.f32.mrb[0].mxu0
        %v2144 = vadd.f32 0.0, %v2143
        %v2145 = vpop.f32.mrb[0].mxu0
        %2146 = vmatprep.mubr.bf16.mxu0 %v1889
        %2147 = vmatmul.mubr.bf16.gmra.mrb[0].mxu0 %v1888
        %v2148 = vpop.f32.mrb[0].mxu0
        %v2149 = vadd.f32 0.0, %v2148
        %v2150 = vpop.f32.mrb[0].mxu0
        %v2151 = vpop.f32.mrb[0].mxu0
        %v2152 = vadd.f32 0.0, %v2151
        %v2153 = vpop.f32.mrb[0].mxu0
        %2154 = vmatprep.mubr.bf16.mxu0 %v1892
        %2155 = vmatmul.mubr.bf16.gmra.mrb[0].mxu0 %v1891
        %v2156 = vpop.f32.mrb[0].mxu0
        %v2157 = vadd.f32 0.0, %v2156
        %v2158 = vpop.f32.mrb[0].mxu0
        %v2159 = vpop.f32.mrb[0].mxu0
        %v2160 = vadd.f32 0.0, %v2159
        %v2161 = vpop.f32.mrb[0].mxu0
        %2162 = vmatprep.mubr.bf16.mxu0 %v1895
        %2163 = vmatmul.mubr.bf16.gmra.mrb[0].mxu0 %v1894
        %v2164 = vpop.f32.mrb[0].mxu0
        %v2165 = vadd.f32 0.0, %v2164
        %v2166 = vpop.f32.mrb[0].mxu0
        %v2167 = vpop.f32.mrb[0].mxu0
        %v2168 = vadd.f32 0.0, %v2167
        %v2169 = vpop.f32.mrb[0].mxu0
        %2170 = vmatprep.mubr.bf16.mxu0 %v1898
        %2171 = vmatmul.mubr.bf16.gmra.mrb[0].mxu0 %v1897
        %v2172 = vpop.f32.mrb[0].mxu0
        %v2173 = vadd.f32 0.0, %v2172
        %v2174 = vpop.f32.mrb[0].mxu0
        %v2175 = vpop.f32.mrb[0].mxu0
        %v2176 = vadd.f32 0.0, %v2175
        %v2177 = vpop.f32.mrb[0].mxu0
        %2178 = vmatprep.mubr.bf16.mxu0 %v1901
        %2179 = vmatmul.mubr.bf16.gmra.mrb[0].mxu0 %v1900
        %v2180 = vpop.f32.mrb[0].mxu0
        %v2181 = vadd.f32 0.0, %v2180
        %v2182 = vpop.f32.mrb[0].mxu0
        %v2183 = vpop.f32.mrb[0].mxu0
        %v2184 = vadd.f32 0.0, %v2183
        %v2185 = vpop.f32.mrb[0].mxu0
        %2186 = vmatprep.mubr.bf16.mxu0 %v1904
        %2187 = vmatmul.mubr.bf16.gmra.mrb[0].mxu0 %v1903
        %v2188 = vpop.f32.mrb[0].mxu0
        %v2189 = vadd.f32 0.0, %v2188
        %v2190 = vpop.f32.mrb[0].mxu0
        %v2191 = vpop.f32.mrb[0].mxu0
        %v2192 = vadd.f32 0.0, %v2191
        %v2193 = vpop.f32.mrb[0].mxu0
        %2194 = vdwg.mxu0
        %2195 = vmatprep.subr.bf16.mxu0 0
        %2196 = vmatpush1.bf16.msra.mxu0 %v2066
        %2197 = vmatprep.subr.bf16.mxu0 0
        %2198 = vmatpush1.bf16.msra.mxu0 %v2067
        %2199 = vmatprep.subr.bf16.mxu0 0
        %2200 = vmatpush1.bf16.msra.mxu0 %v2068
        %2201 = vmatprep.subr.bf16.mxu0 0
        %2202 = vmatpush1.bf16.msra.mxu0 %v2069
        %2203 = vmatprep.subr.bf16.mxu0 0
        %2204 = vmatpush1.bf16.msra.mxu0 %v2070
        %2205 = vmatprep.subr.bf16.mxu0 0
        %2206 = vmatpush1.bf16.msra.mxu0 %v2071
        %2207 = vmatprep.subr.bf16.mxu0 0
        %2208 = vmatpush1.bf16.msra.mxu0 %v2072
        %2209 = vmatprep.subr.bf16.mxu0 0
        %2210 = vmatpush1.bf16.msra.mxu0 %v2073
        %2211 = vmatprep.subr.bf16.mxu0 0
        %2212 = vmatpush1.bf16.msra.mxu0 0
        %2213 = vmatprep.subr.bf16.mxu0 0
        %2214 = vmatpush1.bf16.msra.mxu0 0
        %2215 = vmatprep.subr.bf16.mxu0 0
        %2216 = vmatpush1.bf16.msra.mxu0 0
        %2217 = vmatprep.subr.bf16.mxu0 0
        %2218 = vmatpush1.bf16.msra.mxu0 0
        %2219 = vmatprep.subr.bf16.mxu0 0
        %2220 = vmatpush1.bf16.msra.mxu0 0
        %2221 = vmatprep.subr.bf16.mxu0 0
        %2222 = vmatpush1.bf16.msra.mxu0 0
        %2223 = vmatprep.subr.bf16.mxu0 0
        %2224 = vmatpush1.bf16.msra.mxu0 0
        %2225 = vmatprep.subr.bf16.mxu0 0
        %2226 = vmatpush1.bf16.msra.mxu0 0
        %2227 = vmatprep.mubr.bf16.mxu0 0
        %2228 = vmatmul.mubr.bf16.gmra.mrb[0].mxu0 %v1884
        %v2229 = vpop.f32.mrb[0].mxu0
        %v2230 = vadd.f32 %v2133, %v2229
        %v2231 = vpop.f32.mrb[0].mxu0
        %v2232 = vpop.f32.mrb[0].mxu0
        %v2233 = vadd.f32 %v2136, %v2232
        %v2234 = vpop.f32.mrb[0].mxu0
        %2235 = vmatprep.mubr.bf16.mxu0 0
        %2236 = vmatmul.mubr.bf16.gmra.mrb[0].mxu0 %v1887
        %v2237 = vpop.f32.mrb[0].mxu0
        %v2238 = vadd.f32 %v2141, %v2237
        %v2239 = vpop.f32.mrb[0].mxu0
        %v2240 = vpop.f32.mrb[0].mxu0
        %v2241 = vadd.f32 %v2144, %v2240
        %v2242 = vpop.f32.mrb[0].mxu0
        %2243 = vmatprep.mubr.bf16.mxu0 0
        %2244 = vmatmul.mubr.bf16.gmra.mrb[0].mxu0 %v1890
        %v2245 = vpop.f32.mrb[0].mxu0
        %v2246 = vadd.f32 %v2149, %v2245
        %v2247 = vpop.f32.mrb[0].mxu0
        %v2248 = vpop.f32.mrb[0].mxu0
        %v2249 = vadd.f32 %v2152, %v2248
        %v2250 = vpop.f32.mrb[0].mxu0
        %2251 = vmatprep.mubr.bf16.mxu0 0
        %2252 = vmatmul.mubr.bf16.gmra.mrb[0].mxu0 %v1893
        %v2253 = vpop.f32.mrb[0].mxu0
        %v2254 = vadd.f32 %v2157, %v2253
        %v2255 = vpop.f32.mrb[0].mxu0
        %v2256 = vpop.f32.mrb[0].mxu0
        %v2257 = vadd.f32 %v2160, %v2256
        %v2258 = vpop.f32.mrb[0].mxu0
        %2259 = vmatprep.mubr.bf16.mxu0 0
        %2260 = vmatmul.mubr.bf16.gmra.mrb[0].mxu0 %v1896
        %v2261 = vpop.f32.mrb[0].mxu0
        %v2262 = vadd.f32 %v2165, %v2261
        %v2263 = vpop.f32.mrb[0].mxu0
        %v2264 = vpop.f32.mrb[0].mxu0
        %v2265 = vadd.f32 %v2168, %v2264
        %v2266 = vpop.f32.mrb[0].mxu0
        %2267 = vmatprep.mubr.bf16.mxu0 0
        %2268 = vmatmul.mubr.bf16.gmra.mrb[0].mxu0 %v1899
        %v2269 = vpop.f32.mrb[0].mxu0
        %v2270 = vadd.f32 %v2173, %v2269
        %v2271 = vpop.f32.mrb[0].mxu0
        %v2272 = vpop.f32.mrb[0].mxu0
        %v2273 = vadd.f32 %v2176, %v2272
        %v2274 = vpop.f32.mrb[0].mxu0
        %2275 = vmatprep.mubr.bf16.mxu0 0
        %2276 = vmatmul.mubr.bf16.gmra.mrb[0].mxu0 %v1902
        %v2277 = vpop.f32.mrb[0].mxu0
        %v2278 = vadd.f32 %v2181, %v2277
        %v2279 = vpop.f32.mrb[0].mxu0
        %v2280 = vpop.f32.mrb[0].mxu0
        %v2281 = vadd.f32 %v2184, %v2280
        %v2282 = vpop.f32.mrb[0].mxu0
        %2283 = vmatprep.mubr.bf16.mxu0 0
        %2284 = vmatmul.mubr.bf16.gmra.mrb[0].mxu0 %v1905
        %v2285 = vpop.f32.mrb[0].mxu0
        %v2286 = vadd.f32 %v2189, %v2285
        %v2287 = vpop.f32.mrb[0].mxu0
        %v2288 = vpop.f32.mrb[0].mxu0
        %v2289 = vadd.f32 %v2192, %v2288
        %v2290 = vpop.f32.mrb[0].mxu0
        %2291 = vdwg.mxu0
        %v2292 = vadd.f32 %v1707, %v2230
        %v2293 = vadd.f32 %v1710, %v2233
        %v2294 = vadd.f32 %v1715, %v2238
        %v2295 = vadd.f32 %v1718, %v2241
        %v2296 = vadd.f32 %v1723, %v2246
        %v2297 = vadd.f32 %v1726, %v2249
        %v2298 = vadd.f32 %v1731, %v2254
        %v2299 = vadd.f32 %v1734, %v2257
        %v2300 = vadd.f32 %v1739, %v2262
        %v2301 = vadd.f32 %v1742, %v2265
        %v2302 = vadd.f32 %v1747, %v2270
        %v2303 = vadd.f32 %v1750, %v2273
        %v2304 = vadd.f32 %v1755, %v2278
        %v2305 = vadd.f32 %v1758, %v2281
        %v2306 = vadd.f32 %v1763, %v2286
        %v2307 = vadd.f32 %v1766, %v2289
        %v2308 = vld [vmem:[%s4] sm:$0x1]
        %v2310 = vlaneseq
        %v2311 = vshrl.u32 %v2310, 7
        %v2312 = vsub.s32 0, %v2311
        %v2313 = vrot.slane %v2308, %v2312
        %v2315 = vadd.f32 %v2292, %v2313
        %v2316 = vadd.f32 %v2293, %v2313
        %v2317 = vadd.f32 %v2294, %v2313
        %v2318 = vadd.f32 %v2295, %v2313
        %v2319 = vadd.f32 %v2296, %v2313
        %v2320 = vadd.f32 %v2297, %v2313
        %v2321 = vadd.f32 %v2298, %v2313
        %v2322 = vadd.f32 %v2299, %v2313
        %v2323 = vadd.f32 %v2300, %v2313
        %v2324 = vadd.f32 %v2301, %v2313
        %v2325 = vadd.f32 %v2302, %v2313
        %v2326 = vadd.f32 %v2303, %v2313
        %v2327 = vadd.f32 %v2304, %v2313
        %v2328 = vadd.f32 %v2305, %v2313
        %v2329 = vadd.f32 %v2306, %v2313
        %v2330 = vadd.f32 %v2307, %v2313
        %v2331 = vmax.f32 %v2315, 0.0
        %v2332 = vmax.f32 %v2316, 0.0
        %v2333 = vmax.f32 %v2317, 0.0
        %v2334 = vmax.f32 %v2318, 0.0
        %v2335 = vmax.f32 %v2319, 0.0
        %v2336 = vmax.f32 %v2320, 0.0
        %v2337 = vmax.f32 %v2321, 0.0
        %v2338 = vmax.f32 %v2322, 0.0
        %v2339 = vmax.f32 %v2323, 0.0
        %v2340 = vmax.f32 %v2324, 0.0
        %v2341 = vmax.f32 %v2325, 0.0
        %v2342 = vmax.f32 %v2326, 0.0
        %v2343 = vmax.f32 %v2327, 0.0
        %v2344 = vmax.f32 %v2328, 0.0
        %v2345 = vmax.f32 %v2329, 0.0
        %v2346 = vmax.f32 %v2330, 0.0
        %v2347 = vpack.c.bf16 %v2332, %v2331
        %v2348 = vpack.c.bf16 %v2334, %v2333
        %v2349 = vpack.c.bf16 %v2336, %v2335
        %v2350 = vpack.c.bf16 %v2338, %v2337
        %v2351 = vpack.c.bf16 %v2340, %v2339
        %v2352 = vpack.c.bf16 %v2342, %v2341
        %v2353 = vpack.c.bf16 %v2344, %v2343
        %v2354 = vpack.c.bf16 %v2346, %v2345
        %v2355 = vld [vmem:[%s5] sm:$0xf]
        %v2356 = vld [vmem:[%s5 + $0x4] sm:$0xf]
        %v2357 = vld [vmem:[%s5 + $0x8] sm:$0xf]
        %v2358 = vld [vmem:[%s5 + $0xc] sm:$0xf]
        %v2359 = vld [vmem:[%s5 + $0x10] sm:$0xf]
        %v2360 = vld [vmem:[%s5 + $0x14] sm:$0xf]
        %v2361 = vld [vmem:[%s5 + $0x18] sm:$0xf]
        %v2362 = vld [vmem:[%s5 + $0x1c] sm:$0xf]
        %v2363 = vld [vmem:[%s5 + $0x20] sm:$0xf]
        %v2364 = vld [vmem:[%s5 + $0x24] sm:$0xf]
        %v2365 = vld [vmem:[%s5 + $0x28] sm:$0xf]
        %v2366 = vld [vmem:[%s5 + $0x2c] sm:$0xf]
        %v2367 = vld [vmem:[%s5 + $0x30] sm:$0xf]
        %v2368 = vld [vmem:[%s5 + $0x34] sm:$0xf]
        %v2369 = vld [vmem:[%s5 + $0x38] sm:$0xf]
        %v2370 = vld [vmem:[%s5 + $0x3c] sm:$0xf]
        %v2371 = vld [vmem:[%s6] sm:$0x1]
        %v2373 = vlaneseq
        %v2374 = vshrl.u32 %v2373, 7
        %v2375 = vsub.s32 0, %v2374
        %v2376 = vrot.slane %v2371, %v2375
        %v2394 = vunpack.c.l.b16 %v2355
        %v2395 = vunpack.c.l.b16 %v2356
        %v2396 = vunpack.c.l.b16 %v2357
        %v2397 = vunpack.c.l.b16 %v2358
        %v2398 = vunpack.c.l.b16 %v2359
        %v2399 = vunpack.c.l.b16 %v2360
        %v2400 = vunpack.c.l.b16 %v2361
        %v2401 = vunpack.c.l.b16 %v2362
        %v2402 = vunpack.c.l.b16 %v2363
        %v2403 = vunpack.c.l.b16 %v2364
        %v2404 = vunpack.c.l.b16 %v2365
        %v2405 = vunpack.c.l.b16 %v2366
        %v2406 = vunpack.c.l.b16 %v2367
        %v2407 = vunpack.c.l.b16 %v2368
        %v2408 = vunpack.c.l.b16 %v2369
        %v2409 = vunpack.c.l.b16 %v2370
        %v2410 = vpack.c.b16 %v2395, %v2394
        %v2411 = vpack.c.b16 %v2397, %v2396
        %v2412 = vpack.c.b16 %v2399, %v2398
        %v2413 = vpack.c.b16 %v2401, %v2400
        %v2414 = vpack.c.b16 %v2403, %v2402
        %v2415 = vpack.c.b16 %v2405, %v2404
        %v2416 = vpack.c.b16 %v2407, %v2406
        %v2417 = vpack.c.b16 %v2409, %v2408
        %2426 = vmatprep.subr.bf16.mxu0 0
        %2427 = vmatpush1.bf16.msra.mxu0 %v2410
        %2428 = vmatprep.subr.bf16.mxu0 0
        %2429 = vmatpush1.bf16.msra.mxu0 %v2411
        %2430 = vmatprep.subr.bf16.mxu0 0
        %2431 = vmatpush1.bf16.msra.mxu0 %v2412
        %2432 = vmatprep.subr.bf16.mxu0 0
        %2433 = vmatpush1.bf16.msra.mxu0 %v2413
        %2434 = vmatprep.subr.bf16.mxu0 0
        %2435 = vmatpush1.bf16.msra.mxu0 %v2414
        %2436 = vmatprep.subr.bf16.mxu0 0
        %2437 = vmatpush1.bf16.msra.mxu0 %v2415
        %2438 = vmatprep.subr.bf16.mxu0 0
        %2439 = vmatpush1.bf16.msra.mxu0 %v2416
        %2440 = vmatprep.subr.bf16.mxu0 0
        %2441 = vmatpush1.bf16.msra.mxu0 %v2417
        %2442 = vmatprep.subr.bf16.mxu0 0
        %2443 = vmatpush1.bf16.msra.mxu0 0
        %2444 = vmatprep.subr.bf16.mxu0 0
        %2445 = vmatpush1.bf16.msra.mxu0 0
        %2446 = vmatprep.subr.bf16.mxu0 0
        %2447 = vmatpush1.bf16.msra.mxu0 0
        %2448 = vmatprep.subr.bf16.mxu0 0
        %2449 = vmatpush1.bf16.msra.mxu0 0
        %2450 = vmatprep.subr.bf16.mxu0 0
        %2451 = vmatpush1.bf16.msra.mxu0 0
        %2452 = vmatprep.subr.bf16.mxu0 0
        %2453 = vmatpush1.bf16.msra.mxu0 0
        %2454 = vmatprep.subr.bf16.mxu0 0
        %2455 = vmatpush1.bf16.msra.mxu0 0
        %2456 = vmatprep.subr.bf16.mxu0 0
        %2457 = vmatpush1.bf16.msra.mxu0 0
        %2458 = vmatprep.mubr.bf16.mxu0 0
        %2459 = vmatmul.mubr.bf16.gmra.mrb[0].mxu0 %v2347
        %v2460 = vpop.f32.mrb[0].mxu0
        %v2461 = vadd.f32 %v2376, %v2460
        %v2462 = vpop.f32.mrb[0].mxu0
        %v2463 = vpop.f32.mrb[0].mxu0
        %v2464 = vadd.f32 %v2376, %v2463
        %v2465 = vpop.f32.mrb[0].mxu0
        %2466 = vmatprep.mubr.bf16.mxu0 0
        %2467 = vmatmul.mubr.bf16.gmra.mrb[0].mxu0 %v2348
        %v2468 = vpop.f32.mrb[0].mxu0
        %v2469 = vadd.f32 %v2376, %v2468
        %v2470 = vpop.f32.mrb[0].mxu0
        %v2471 = vpop.f32.mrb[0].mxu0
        %v2472 = vadd.f32 %v2376, %v2471
        %v2473 = vpop.f32.mrb[0].mxu0
        %2474 = vmatprep.mubr.bf16.mxu0 0
        %2475 = vmatmul.mubr.bf16.gmra.mrb[0].mxu0 %v2349
        %v2476 = vpop.f32.mrb[0].mxu0
        %v2477 = vadd.f32 %v2376, %v2476
        %v2478 = vpop.f32.mrb[0].mxu0
        %v2479 = vpop.f32.mrb[0].mxu0
        %v2480 = vadd.f32 %v2376, %v2479
        %v2481 = vpop.f32.mrb[0].mxu0
        %2482 = vmatprep.mubr.bf16.mxu0 0
        %2483 = vmatmul.mubr.bf16.gmra.mrb[0].mxu0 %v2350
        %v2484 = vpop.f32.mrb[0].mxu0
        %v2485 = vadd.f32 %v2376, %v2484
        %v2486 = vpop.f32.mrb[0].mxu0
        %v2487 = vpop.f32.mrb[0].mxu0
        %v2488 = vadd.f32 %v2376, %v2487
        %v2489 = vpop.f32.mrb[0].mxu0
        %2490 = vmatprep.mubr.bf16.mxu0 0
        %2491 = vmatmul.mubr.bf16.gmra.mrb[0].mxu0 %v2351
        %v2492 = vpop.f32.mrb[0].mxu0
        %v2493 = vadd.f32 %v2376, %v2492
        %v2494 = vpop.f32.mrb[0].mxu0
        %v2495 = vpop.f32.mrb[0].mxu0
        %v2496 = vadd.f32 %v2376, %v2495
        %v2497 = vpop.f32.mrb[0].mxu0
        %2498 = vmatprep.mubr.bf16.mxu0 0
        %2499 = vmatmul.mubr.bf16.gmra.mrb[0].mxu0 %v2352
        %v2500 = vpop.f32.mrb[0].mxu0
        %v2501 = vadd.f32 %v2376, %v2500
        %v2502 = vpop.f32.mrb[0].mxu0
        %v2503 = vpop.f32.mrb[0].mxu0
        %v2504 = vadd.f32 %v2376, %v2503
        %v2505 = vpop.f32.mrb[0].mxu0
        %2506 = vmatprep.mubr.bf16.mxu0 0
        %2507 = vmatmul.mubr.bf16.gmra.mrb[0].mxu0 %v2353
        %v2508 = vpop.f32.mrb[0].mxu0
        %v2509 = vadd.f32 %v2376, %v2508
        %v2510 = vpop.f32.mrb[0].mxu0
        %v2511 = vpop.f32.mrb[0].mxu0
        %v2512 = vadd.f32 %v2376, %v2511
        %v2513 = vpop.f32.mrb[0].mxu0
        %2514 = vmatprep.mubr.bf16.mxu0 0
        %2515 = vmatmul.mubr.bf16.gmra.mrb[0].mxu0 %v2354
        %v2516 = vpop.f32.mrb[0].mxu0
        %v2517 = vadd.f32 %v2376, %v2516
        %v2518 = vpop.f32.mrb[0].mxu0
        %v2519 = vpop.f32.mrb[0].mxu0
        %v2520 = vadd.f32 %v2376, %v2519
        %v2521 = vpop.f32.mrb[0].mxu0
        %2522 = vdwg.mxu0
        %v2523 = vmax.f32 %v2461, 0.0
        %v2524 = vmax.f32 %v2464, 0.0
        %v2525 = vmax.f32 %v2469, 0.0
        %v2526 = vmax.f32 %v2472, 0.0
        %v2527 = vmax.f32 %v2477, 0.0
        %v2528 = vmax.f32 %v2480, 0.0
        %v2529 = vmax.f32 %v2485, 0.0
        %v2530 = vmax.f32 %v2488, 0.0
        %v2531 = vmax.f32 %v2493, 0.0
        %v2532 = vmax.f32 %v2496, 0.0
        %v2533 = vmax.f32 %v2501, 0.0
        %v2534 = vmax.f32 %v2504, 0.0
        %v2535 = vmax.f32 %v2509, 0.0
        %v2536 = vmax.f32 %v2512, 0.0
        %v2537 = vmax.f32 %v2517, 0.0
        %v2538 = vmax.f32 %v2520, 0.0
        %v2539 = vld [vmem:[%s300] sm:$0xf]
        %v2540 = vld [vmem:[%s300 + $0x4] sm:$0xf]
        %v2541 = vld [vmem:[%s300 + $0x8] sm:$0xf]
        %v2542 = vld [vmem:[%s300 + $0xc] sm:$0xf]
        %v2543 = vld [vmem:[%s300 + $0x10] sm:$0xf]
        %v2544 = vld [vmem:[%s300 + $0x14] sm:$0xf]
        %v2545 = vld [vmem:[%s300 + $0x18] sm:$0xf]
        %v2546 = vld [vmem:[%s300 + $0x1c] sm:$0xf]
        %v2547 = vld [vmem:[%s300 + $0x20] sm:$0xf]
        %v2548 = vld [vmem:[%s300 + $0x24] sm:$0xf]
        %v2549 = vld [vmem:[%s300 + $0x28] sm:$0xf]
        %v2550 = vld [vmem:[%s300 + $0x2c] sm:$0xf]
        %v2551 = vld [vmem:[%s300 + $0x30] sm:$0xf]
        %v2552 = vld [vmem:[%s300 + $0x34] sm:$0xf]
        %v2553 = vld [vmem:[%s300 + $0x38] sm:$0xf]
        %v2554 = vld [vmem:[%s300 + $0x3c] sm:$0xf]
        %v2555 = vunpack.c.l.bf16 %v2539
        %v2556 = vunpack.c.l.bf16 %v2540
        %v2557 = vunpack.c.l.bf16 %v2541
        %v2558 = vunpack.c.l.bf16 %v2542
        %v2559 = vunpack.c.l.bf16 %v2543
        %v2560 = vunpack.c.l.bf16 %v2544
        %v2561 = vunpack.c.l.bf16 %v2545
        %v2562 = vunpack.c.l.bf16 %v2546
        %v2563 = vunpack.c.l.bf16 %v2547
        %v2564 = vunpack.c.l.bf16 %v2548
        %v2565 = vunpack.c.l.bf16 %v2549
        %v2566 = vunpack.c.l.bf16 %v2550
        %v2567 = vunpack.c.l.bf16 %v2551
        %v2568 = vunpack.c.l.bf16 %v2552
        %v2569 = vunpack.c.l.bf16 %v2553
        %v2570 = vunpack.c.l.bf16 %v2554
        %v2571 = vadd.f32 %v2555, %v2523
        %v2572 = vadd.f32 %v2556, %v2524
        %v2573 = vadd.f32 %v2557, %v2525
        %v2574 = vadd.f32 %v2558, %v2526
        %v2575 = vadd.f32 %v2559, %v2527
        %v2576 = vadd.f32 %v2560, %v2528
        %v2577 = vadd.f32 %v2561, %v2529
        %v2578 = vadd.f32 %v2562, %v2530
        %v2579 = vadd.f32 %v2563, %v2531
        %v2580 = vadd.f32 %v2564, %v2532
        %v2581 = vadd.f32 %v2565, %v2533
        %v2582 = vadd.f32 %v2566, %v2534
        %v2583 = vadd.f32 %v2567, %v2535
        %v2584 = vadd.f32 %v2568, %v2536
        %v2585 = vadd.f32 %v2569, %v2537
        %v2586 = vadd.f32 %v2570, %v2538
        %v2587 = vpack.c.bf16 %v2572, %v2571
        %v2588 = vpack.c.bf16 %v2574, %v2573
        %v2589 = vpack.c.bf16 %v2576, %v2575
        %v2590 = vpack.c.bf16 %v2578, %v2577
        %v2591 = vpack.c.bf16 %v2580, %v2579
        %v2592 = vpack.c.bf16 %v2582, %v2581
        %v2593 = vpack.c.bf16 %v2584, %v2583
        %v2594 = vpack.c.bf16 %v2586, %v2585
        %v2603 = vunpack.c.l.b16 %v2587
        %v2604 = vunpack.c.h.b16 %v2587
        %v2605 = vunpack.c.l.b16 %v2588
        %v2606 = vunpack.c.h.b16 %v2588
        %v2607 = vunpack.c.l.b16 %v2589
        %v2608 = vunpack.c.h.b16 %v2589
        %v2609 = vunpack.c.l.b16 %v2590
        %v2610 = vunpack.c.h.b16 %v2590
        %v2611 = vunpack.c.l.b16 %v2591
        %v2612 = vunpack.c.h.b16 %v2591
        %v2613 = vunpack.c.l.b16 %v2592
        %v2614 = vunpack.c.h.b16 %v2592
        %v2615 = vunpack.c.l.b16 %v2593
        %v2616 = vunpack.c.h.b16 %v2593
        %v2617 = vunpack.c.l.b16 %v2594
        %v2618 = vunpack.c.h.b16 %v2594
        %v2619 = vpack.c.b16 %v2603, %v2603
        %v2620 = vpack.c.b16 %v2604, %v2604
        %v2621 = vpack.c.b16 %v2605, %v2605
        %v2622 = vpack.c.b16 %v2606, %v2606
        %v2623 = vpack.c.b16 %v2607, %v2607
        %v2624 = vpack.c.b16 %v2608, %v2608
        %v2625 = vpack.c.b16 %v2609, %v2609
        %v2626 = vpack.c.b16 %v2610, %v2610
        %v2627 = vpack.c.b16 %v2611, %v2611
        %v2628 = vpack.c.b16 %v2612, %v2612
        %v2629 = vpack.c.b16 %v2613, %v2613
        %v2630 = vpack.c.b16 %v2614, %v2614
        %v2631 = vpack.c.b16 %v2615, %v2615
        %v2632 = vpack.c.b16 %v2616, %v2616
        %v2633 = vpack.c.b16 %v2617, %v2617
        %v2634 = vpack.c.b16 %v2618, %v2618
        %2651 = vst [vmem:[%s300] sm:$0xf] %v2619
        %2652 = vst [vmem:[%s300 + $0x4] sm:$0xf] %v2620
        %2653 = vst [vmem:[%s300 + $0x8] sm:$0xf] %v2621
        %2654 = vst [vmem:[%s300 + $0xc] sm:$0xf] %v2622
        %2655 = vst [vmem:[%s300 + $0x10] sm:$0xf] %v2623
        %2656 = vst [vmem:[%s300 + $0x14] sm:$0xf] %v2624
        %2657 = vst [vmem:[%s300 + $0x18] sm:$0xf] %v2625
        %2658 = vst [vmem:[%s300 + $0x1c] sm:$0xf] %v2626
        %2659 = vst [vmem:[%s300 + $0x20] sm:$0xf] %v2627
        %2660 = vst [vmem:[%s300 + $0x24] sm:$0xf] %v2628
        %2661 = vst [vmem:[%s300 + $0x28] sm:$0xf] %v2629
        %2662 = vst [vmem:[%s300 + $0x2c] sm:$0xf] %v2630
        %2663 = vst [vmem:[%s300 + $0x30] sm:$0xf] %v2631
        %2664 = vst [vmem:[%s300 + $0x34] sm:$0xf] %v2632
        %2665 = vst [vmem:[%s300 + $0x38] sm:$0xf] %v2633
        %2666 = vst [vmem:[%s300 + $0x3c] sm:$0xf] %v2634
        %s2667 = sand.u32 %s196, 1
        %s2668 = scalar_lea.sflag [#allocation5], %s2667
        %s2669 = sand.u32 %s196, 1
        %s2670 = smul.addr %s2669, 64
        %s2671 = scalar_lea.vmem [#allocation6], %s2670
        // Predicated region
        $region61: #{tpu_custom_call.1} parent=47 // pred_check
          %p2672 = pneg %p206
        $region62: #{tpu_custom_call.1} parent=47 // pred_check_branch
          %2674 = sbr.rel (%p2672) target = $region64
        $region63: #{tpu_custom_call.1} parent=47 // pred_region
          %s2675 = smul.u32 8, %s27
          %s2677 = ssub.s32 1024, 1024
          %2678 = vsyncadd %s2668, %s2677
          %s2679 = smul.addr %s2675, 2
          %s2680 = smul.addr %s26, 32
          %s2681 = sadd.s32 %s2679, %s2680
          %s2682 = smul.addr %s2681, 64
          %s2683 = scalar_lea.hbm %s7, %s2682
          %s2684 = sshll.u32 %s2671, 4
          %s2685 = int_to_ptr.vmem [resolvable:$true] %s2684
          %2690 = dma.vmem_to_hbm [thread:$0]  %s2685, 1024, %s2683, %s2668, 64, 64, 4
        $region64: #{tpu_custom_call.1} parent=47 // pred_fallthru
          _
      $region48: #{tpu_custom_call.1} parent=5 // pred_fallthru
        _
      %p2691 = scmp.le.s32.totalorder 2, %s17
      // Predicated region
      $region65: #{tpu_custom_call.1} parent=5 // pred_check
        %p2692 = pneg %p2691
      $region66: #{tpu_custom_call.1} parent=5 // pred_check_branch
        %2694 = sbr.rel (%p2692) target = $region68
      $region67: #{tpu_custom_call.1} parent=5 // pred_region
        %s2695 = ssub.s32 %s17, 2
        // Predicated region
        $region69: #{tpu_custom_call.1} parent=67 // pred_check
          %p2696 = pneg %p212
        $region70: #{tpu_custom_call.1} parent=67 // pred_check_branch
          %2698 = sbr.rel (%p2696) target = $region72
        $region71: #{tpu_custom_call.1} parent=67 // pred_region
          %s2699 = sand.u32 %s197, 1
          %s2700 = scalar_lea.sflag [#allocation5], %s2699
          %s2701 = sand.u32 %s197, 1
          %s2702 = smul.addr %s2701, 64
          %s2703 = scalar_lea.vmem [#allocation6], %s2702
          %2704 = dma.done %s2700, 1024
        $region72: #{tpu_custom_call.1} parent=67 // pred_fallthru
          _
      $region68: #{tpu_custom_call.1} parent=5 // pred_fallthru
        _
    $region6: #{tpu_custom_call.1} parent=1 // loop_footer
      %s21 = sadd.s32 1, %s17
    $region7: #{tpu_custom_call.1} parent=1 // loop_footer_branch
      %16 = sbr.rel target = $region3
    $region8: #{tpu_custom_call.1} parent=1 // loop_exit
      _
    %2705 = vsyncpa [#allocation4], 1
    %s2706 = scalar_lea.sflag [#allocation4], 1
    %2707 = vsyncpa %s2706, 1
    %2708 = vsyncpa [#allocation5], 1
    %s2709 = scalar_lea.sflag [#allocation5], 1
    %2710 = vsyncpa %s2709, 1

</llo_original>
